<compile_context>
chip_gen: v6e
topology: v6e:2x2x1
jax: 0.10.0
libtpu: 0.0.40
codegen_flags: <defaults>
</compile_context>

<pallas_src>
import functools

import jax
import jax.numpy as jnp
from jax.experimental import pallas as pl
from jax.experimental.pallas import tpu as pltpu

D_IN = 768        # LSTM input size (fixed by the module definition)
H = 16            # LSTM hidden size
FOUR_H = 4 * H    # 64
N_OUT = 6         # Linear output size

_TM_CAP = 1024    # Pass-1 row-tile cap (multiple of 8)
_TB_CAP = 64      # Pass-2 batch rows per grid step (multiple of 8)
_TT_CAP = 32      # Pass-2 timesteps per grid step (statically unrolled, mult. of 8)


# ---------------------------------------------------------------------------
# Pass 1: hoisted input projection  gates_x = x @ W_ih^T + (b_ih + b_hh)
# ---------------------------------------------------------------------------
def _proj_kernel(x_ref, w_ref, b_ref, out_ref):
    # x_ref:   (tm, D_IN)     streamed input rows (bf16 or f32)
    # w_ref:   (D_IN, 4H)     pre-transposed W_ih
    # b_ref:   (1, 4H)        b_ih + b_hh (f32)
    # out_ref: (tm, 4H)       f32 pre-activation gates
    x = x_ref[...].astype(w_ref.dtype)   # no-op when x already matches w's dtype
    out_ref[...] = (
        jnp.dot(x, w_ref[...], preferred_element_type=jnp.float32) + b_ref[...]
    )


# ---------------------------------------------------------------------------
# Pass 2: reverse-time recurrence (batch-tiled, time-chunk streamed)
#         + fused Linear(16,6) + ReLU
# ---------------------------------------------------------------------------
def _recurrence_kernel(gates_ref, w_hh_ref, w_out_ref, b_out_ref, out_ref,
                       h_ref, c_ref, *, tt, rem):
    # gates_ref: (TB, TT, 4H) f32   one time-chunk of precomputed x@W_ih^T + bias
    # w_hh_ref:  (H, 4H)      f32
    # w_out_ref: (H, N_OUT)   f32
    # b_out_ref: (1, N_OUT)   f32
    # out_ref:   (TB, N_OUT)
    # h_ref/c_ref: (TB, H) f32 VMEM scratch carried across time chunks.
    s = pl.program_id(1)
    nc = pl.num_programs(1)

    @pl.when(s == 0)
    def _init():
        h_ref[...] = jnp.zeros_like(h_ref)
        c_ref[...] = jnp.zeros_like(c_ref)

    w_hh = w_hh_ref[...]          # hoisted: loaded once per chunk

    def run_chunk(nsteps):
        def body():
            h = h_ref[...]
            c = c_ref[...]
            # Reverse time inside the chunk; the grid walks chunks in reverse,
            # so global time order is T-1 ... 0.  All slices are static.
            for j in range(nsteps - 1, -1, -1):
                pre = gates_ref[:, j, :] + jnp.dot(
                    h, w_hh, preferred_element_type=jnp.float32)
                # Dense-vreg activations over the full (TB, 4H) tile; gate
                # order is PyTorch's (i, f, g, o).
                sig = jax.nn.sigmoid(pre)
                tnh = jnp.tanh(pre)
                i_g = sig[:, 0 * H:1 * H]
                f_g = sig[:, 1 * H:2 * H]
                g_g = tnh[:, 2 * H:3 * H]
                o_g = sig[:, 3 * H:4 * H]
                c = f_g * c + i_g * g_g
                h = o_g * jnp.tanh(c)
            h_ref[...] = h
            c_ref[...] = c
        return body

    if rem == tt:
        # T divides evenly into chunks: single code path, no branch.
        run_chunk(tt)()
    else:
        # s == 0 is the ragged (latest-in-time) chunk with only `rem` valid steps.
        pl.when(s == 0)(run_chunk(rem))
        pl.when(s != 0)(run_chunk(tt))

    @pl.when(s == nc - 1)
    def _finalize():
        logits = (jnp.dot(h_ref[...], w_out_ref[...],
                          preferred_element_type=jnp.float32) + b_out_ref[...])
        out_ref[...] = jnp.maximum(logits, 0.0).astype(out_ref.dtype)


# ---------------------------------------------------------------------------
# One-time parameter prepack (hoisted out of the per-call path).
# ---------------------------------------------------------------------------
def prepack_params(params, proj_dtype=jnp.bfloat16):
    """Transpose / cast / fuse parameters once; pass the result to every call."""
    return {
        "w_ih_t": jnp.asarray(params["w_ih_rev"]).T.astype(proj_dtype),   # (768, 4H)
        "b_gate": (jnp.asarray(params["b_ih_rev"]) + jnp.asarray(params["b_hh_rev"])
                   ).reshape(1, FOUR_H).astype(jnp.float32),               # (1, 4H)
        "w_hh_t": jnp.asarray(params["w_hh_rev"]).T.astype(jnp.float32),   # (H, 4H)
        "w_out_t": jnp.asarray(params["w_out"]).T.astype(jnp.float32),     # (H, N_OUT)
        "b_out": jnp.asarray(params["b_out"]).reshape(1, N_OUT).astype(jnp.float32),
    }


# ---------------------------------------------------------------------------
# Forward
# ---------------------------------------------------------------------------
@jax.jit
def lstm_net_forward(x, packed):
    """x: (B, T, 768), batch_first like the PyTorch module.

    For best Pass-1 bandwidth, arrange for x to arrive in bf16 (it is streamed
    as-is); the in-kernel cast to the weight dtype is only a fallback.
    """
    B, T, D = x.shape
    assert D == D_IN
    M = B * T

    # ----- Pass 1: one big streamed matmul over all timesteps -----
    tm = M if M <= _TM_CAP else _TM_CAP           # full dim or multiple of 8
    x2d = x.reshape(M, D)                         # free reshape; no padding copy
    gates2d = pl.pallas_call(
        _proj_kernel,
        out_shape=jax.ShapeDtypeStruct((M, FOUR_H), jnp.float32),
        grid=(pl.cdiv(M, tm),),                   # ragged last tile clipped by Pallas
        in_specs=[
            pl.BlockSpec((tm, D_IN), lambda i: (i, 0)),       # streamed x rows
            pl.BlockSpec((D_IN, FOUR_H), lambda i: (0, 0)),   # resident W_ih
            pl.BlockSpec((1, FOUR_H), lambda i: (0, 0)),      # resident bias
        ],
        out_specs=pl.BlockSpec((tm, FOUR_H), lambda i: (i, 0)),
        compiler_params=pltpu.CompilerParams(
            dimension_semantics=("parallel",)),   # shards row tiles on v7x megacore
    )(x2d, packed["w_ih_t"], packed["b_gate"])

    # Keep gates batch-major; reshape is free and there is NO transpose / extra
    # dispatch between the passes.
    gates = gates2d.reshape(B, T, FOUR_H)

    # ----- Pass 2: batch-tiled, time-chunk-streamed reverse recurrence -----
    tb = B if B <= _TB_CAP else _TB_CAP           # full dim or multiple of 8
    tt = T if T <= _TT_CAP else _TT_CAP           # full dim or multiple of 8
    nb = pl.cdiv(B, tb)
    nc = pl.cdiv(T, tt)
    rem = T - (nc - 1) * tt                       # valid steps in the ragged chunk

    kernel = functools.partial(_recurrence_kernel, tt=tt, rem=rem)
    return pl.pallas_call(
        kernel,
        out_shape=jax.ShapeDtypeStruct((B, N_OUT), jnp.float32),
        grid=(nb, nc),
        in_specs=[
            # Walk time chunks in REVERSE so the recurrence sees t = T-1 ... 0.
            pl.BlockSpec((tb, tt, FOUR_H), lambda b, s: (b, nc - 1 - s, 0)),
            pl.BlockSpec((H, FOUR_H), lambda b, s: (0, 0)),
            pl.BlockSpec((H, N_OUT), lambda b, s: (0, 0)),
            pl.BlockSpec((1, N_OUT), lambda b, s: (0, 0)),
        ],
        out_specs=pl.BlockSpec((tb, N_OUT), lambda b, s: (b, 0)),
        scratch_shapes=[pltpu.VMEM((tb, H), jnp.float32),   # h carry
                        pltpu.VMEM((tb, H), jnp.float32)],  # c carry
        compiler_params=pltpu.CompilerParams(
            dimension_semantics=("parallel", "arbitrary")),  # batch shards on v7x
    )(gates, packed["w_hh_t"], packed["w_out_t"], packed["b_out"])


# ---------------------------------------------------------------------------
# Pure-JAX reference (same math as PyTorch reverse-direction LSTM + fc), f32.
# ---------------------------------------------------------------------------
def _reference_forward(x, params):
    B, T, D = x.shape
    w_ih = params["w_ih_rev"]
    w_hh = params["w_hh_rev"]
    b = params["b_ih_rev"] + params["b_hh_rev"]
    h = jnp.zeros((B, H), jnp.float32)
    c = jnp.zeros((B, H), jnp.float32)
    for t in range(T - 1, -1, -1):
        gates = x[:, t, :] @ w_ih.T + h @ w_hh.T + b
        i_g = jax.nn.sigmoid(gates[:, 0 * H:1 * H])
        f_g = jax.nn.sigmoid(gates[:, 1 * H:2 * H])
        g_g = jnp.tanh(gates[:, 2 * H:3 * H])
        o_g = jax.nn.sigmoid(gates[:, 3 * H:4 * H])
        c = f_g * c + i_g * g_g
        h = o_g * jnp.tanh(c)
    out = h @ params["w_out"].T + params["b_out"]
    return jnp.maximum(out, 0.0)


def _init_params(key):
    # Deterministic synthetic init (PyTorch-shape-compatible; only the reverse
    # direction + output fc matter for forward()).
    ks = jax.random.split(key, 6)
    s = 1.0 / jnp.sqrt(H)
    return {
        "w_ih_rev": jax.random.uniform(ks[0], (4 * H, D_IN), jnp.float32, -s, s),
        "w_hh_rev": jax.random.uniform(ks[1], (4 * H, H), jnp.float32, -s, s),
        "b_ih_rev": jax.random.uniform(ks[2], (4 * H,), jnp.float32, -s, s),
        "b_hh_rev": jax.random.uniform(ks[3], (4 * H,), jnp.float32, -s, s),
        "w_out": jax.random.uniform(ks[4], (N_OUT, H), jnp.float32, -s, s),
        "b_out": jax.random.uniform(ks[5], (N_OUT,), jnp.float32, -s, s),
    }


if __name__ == "__main__":
    key = jax.random.PRNGKey(0)
    k_x, k_p = jax.random.split(key)
    B, T = 2, 8
    x = jax.random.normal(k_x, (B, T, D_IN), jnp.float32)
    params = _init_params(k_p)

    ref = jax.block_until_ready(_reference_forward(x, params))

    # Exact path (f32 weights, f32 x): tight check of kernel mechanics.
    packed_f32 = prepack_params(params, proj_dtype=jnp.float32)
    out_f32 = jax.block_until_ready(lstm_net_forward(x, packed_f32))
    assert out_f32.shape == (B, N_OUT)
    assert jnp.allclose(out_f32, ref, atol=1e-4, rtol=1e-4)

    # Fast path: x arrives in bf16 (halves the dominant HBM read stream) and
    # W_ih is prepacked in bf16; accumulation and the recurrence stay f32.
    packed_bf16 = prepack_params(params, proj_dtype=jnp.bfloat16)
    x_bf16 = x.astype(jnp.bfloat16)   # stands in for "produced upstream in bf16"
    out_bf16 = jax.block_until_ready(lstm_net_forward(x_bf16, packed_bf16))
    assert out_bf16.shape == (B, N_OUT)
    assert jnp.allclose(out_bf16, ref, atol=5e-2, rtol=5e-2)

    print("KERNEL_OK")
</pallas_src>

<mosaic_0001>
module attributes {stable_mosaic.version = 11 : i64} {
  func.func @_proj_kernel(%arg0: i32, %arg1: memref<16x768xf32, #tpu.memory_space<vmem>>, %arg2: memref<768x64xf32, #tpu.memory_space<vmem>>, %arg3: memref<1x64xf32, #tpu.memory_space<vmem>>, %arg4: memref<16x64xf32, #tpu.memory_space<vmem>>) attributes {dimension_semantics = [#tpu.dimension_semantics<parallel>], iteration_bounds = array<i64: 1>, scalar_prefetch = 0 : i64, scratch_operands = 0 : i64, tpu.core_type = #tpu.core_type<tc>, window_params = [{transform_indices = @transform_0, window_bounds = array<i64: 16, 768>}, {pipeline_mode = #tpu.pipeline_mode<synchronous>, transform_indices = @transform_1, window_bounds = array<i64: 768, 64>}, {pipeline_mode = #tpu.pipeline_mode<synchronous>, transform_indices = @transform_2, window_bounds = array<i64: 1, 64>}, {transform_indices = @transform_3, window_bounds = array<i64: 16, 64>}]} {
    %c0 = arith.constant 0 : index
    %c0_0 = arith.constant 0 : index
    %0 = vector.load %arg1[%c0, %c0_0] : memref<16x768xf32, #tpu.memory_space<vmem>>, vector<16x768xf32>
    %c0_1 = arith.constant 0 : index
    %c0_2 = arith.constant 0 : index
    %1 = vector.load %arg2[%c0_1, %c0_2] : memref<768x64xf32, #tpu.memory_space<vmem>>, vector<768x64xf32>
    %cst = arith.constant dense<0.000000e+00> : vector<16x64xf32>
    %2 = tpu.matmul %0, %1, %cst {dimension_numbers = #tpu.dot_dimension_numbers<[1], [0], [0], [1], [0, 0, 1, 1], [], []>} : vector<16x768xf32>, vector<768x64xf32>, vector<16x64xf32> -> vector<16x64xf32>
    %c0_3 = arith.constant 0 : index
    %c0_4 = arith.constant 0 : index
    %3 = vector.load %arg3[%c0_3, %c0_4] : memref<1x64xf32, #tpu.memory_space<vmem>>, vector<1x64xf32>
    %4 = vector.broadcast %3 : vector<1x64xf32> to vector<16x64xf32>
    %5 = arith.addf %2, %4 : vector<16x64xf32>
    %c0_5 = arith.constant 0 : index
    %c0_6 = arith.constant 0 : index
    %6 = vector.load %arg4[%c0_5, %c0_6] : memref<16x64xf32, #tpu.memory_space<vmem>>, vector<16x64xf32>
    tpu.vector_store %arg4[%c0_5, %c0_6], %5 {strides = array<i32>} : memref<16x64xf32, #tpu.memory_space<vmem>>, vector<16x64xf32>,
    return
  }
  func.func @transform_0(%arg0: i32) -> (i32, i32) {
    %c0_i32 = arith.constant 0 : i32
    %c0_i32_0 = arith.constant 0 : i32
    return %arg0, %c0_i32 : i32, i32
  }
  func.func @transform_1(%arg0: i32) -> (i32, i32) {
    %c0_i32 = arith.constant 0 : i32
    %c0_i32_0 = arith.constant 0 : i32
    %c0_i32_1 = arith.constant 0 : i32
    return %c0_i32, %c0_i32_0 : i32, i32
  }
  func.func @transform_2(%arg0: i32) -> (i32, i32) {
    %c0_i32 = arith.constant 0 : i32
    %c0_i32_0 = arith.constant 0 : i32
    %c0_i32_1 = arith.constant 0 : i32
    return %c0_i32, %c0_i32_0 : i32, i32
  }
  func.func @transform_3(%arg0: i32) -> (i32, i32) {
    %c0_i32 = arith.constant 0 : i32
    %c0_i32_0 = arith.constant 0 : i32
    return %arg0, %c0_i32 : i32, i32
  }
}

module attributes {stable_mosaic.version = 11 : i64} {
  func.func @_recurrence_kernel(%arg0: i32, %arg1: i32, %arg2: memref<2x8x64xf32, #tpu.memory_space<vmem>>, %arg3: memref<16x64xf32, #tpu.memory_space<vmem>>, %arg4: memref<16x6xf32, #tpu.memory_space<vmem>>, %arg5: memref<1x6xf32, #tpu.memory_space<vmem>>, %arg6: memref<2x6xf32, #tpu.memory_space<vmem>>, %arg7: memref<2x16xf32, #tpu.memory_space<vmem>>, %arg8: memref<2x16xf32, #tpu.memory_space<vmem>>) attributes {dimension_semantics = [#tpu.dimension_semantics<parallel>, #tpu.dimension_semantics<arbitrary>], iteration_bounds = array<i64: 1, 1>, scalar_prefetch = 0 : i64, scratch_operands = 2 : i64, tpu.core_type = #tpu.core_type<tc>, window_params = [{transform_indices = @transform_0, window_bounds = array<i64: 2, 8, 64>}, {pipeline_mode = #tpu.pipeline_mode<synchronous>, transform_indices = @transform_1, window_bounds = array<i64: 16, 64>}, {pipeline_mode = #tpu.pipeline_mode<synchronous>, transform_indices = @transform_2, window_bounds = array<i64: 16, 6>}, {pipeline_mode = #tpu.pipeline_mode<synchronous>, transform_indices = @transform_3, window_bounds = array<i64: 1, 6>}, {transform_indices = @transform_4, window_bounds = array<i64: 2, 6>}]} {
    %c0_i32 = arith.constant 0 : i32
    %0 = arith.cmpi eq, %arg1, %c0_i32 : i32
    %1 = arith.extui %0 : i1 to i32
    %c0_i32_0 = arith.constant 0 : i32
    %2 = arith.cmpi ne, %1, %c0_i32_0 : i32
    scf.if %2 {
      %cst_44 = arith.constant 0.000000e+00 : f32
      %163 = vector.broadcast %cst_44 : f32 to vector<2x16xf32>
      %c0_45 = arith.constant 0 : index
      %c0_46 = arith.constant 0 : index
      %164 = vector.load %arg7[%c0_45, %c0_46] : memref<2x16xf32, #tpu.memory_space<vmem>>, vector<2x16xf32>
      tpu.vector_store %arg7[%c0_45, %c0_46], %163 {strides = array<i32>} : memref<2x16xf32, #tpu.memory_space<vmem>>, vector<2x16xf32>,
      %cst_47 = arith.constant 0.000000e+00 : f32
      %165 = vector.broadcast %cst_47 : f32 to vector<2x16xf32>
      %c0_48 = arith.constant 0 : index
      %c0_49 = arith.constant 0 : index
      %166 = vector.load %arg8[%c0_48, %c0_49] : memref<2x16xf32, #tpu.memory_space<vmem>>, vector<2x16xf32>
      tpu.vector_store %arg8[%c0_48, %c0_49], %165 {strides = array<i32>} : memref<2x16xf32, #tpu.memory_space<vmem>>, vector<2x16xf32>,
    } else {
    }
    %c0 = arith.constant 0 : index
    %c0_1 = arith.constant 0 : index
    %3 = vector.load %arg3[%c0, %c0_1] : memref<16x64xf32, #tpu.memory_space<vmem>>, vector<16x64xf32>
    %c0_2 = arith.constant 0 : index
    %c0_3 = arith.constant 0 : index
    %4 = vector.load %arg7[%c0_2, %c0_3] : memref<2x16xf32, #tpu.memory_space<vmem>>, vector<2x16xf32>
    %c0_4 = arith.constant 0 : index
    %c0_5 = arith.constant 0 : index
    %5 = vector.load %arg8[%c0_4, %c0_5] : memref<2x16xf32, #tpu.memory_space<vmem>>, vector<2x16xf32>
    %c0_6 = arith.constant 0 : index
    %c7 = arith.constant 7 : index
    %c0_7 = arith.constant 0 : index
    %6 = vector.load %arg2[%c0_6, %c7, %c0_7] : memref<2x8x64xf32, #tpu.memory_space<vmem>>, vector<2x1x64xf32>
    %7 = vector.shape_cast %6 : vector<2x1x64xf32> to vector<2x64xf32>
    %cst = arith.constant dense<0.000000e+00> : vector<2x64xf32>
    %8 = tpu.matmul %4, %3, %cst {dimension_numbers = #tpu.dot_dimension_numbers<[1], [0], [0], [1], [0, 0, 1, 1], [], []>} : vector<2x16xf32>, vector<16x64xf32>, vector<2x64xf32> -> vector<2x64xf32>
    %9 = arith.addf %7, %8 : vector<2x64xf32>
    %10 = arith.negf %9 : vector<2x64xf32>
    %11 = math.exp %10 : vector<2x64xf32>
    %cst_8 = arith.constant 1.000000e+00 : f32
    %12 = vector.broadcast %cst_8 : f32 to vector<2x64xf32>
    %13 = arith.addf %12, %11 : vector<2x64xf32>
    %14 = arith.divf %12, %13 : vector<2x64xf32>
    %15 = math.tanh %9 : vector<2x64xf32>
    %16 = vector.extract_strided_slice %14 {offsets = [0, 0], sizes = [2, 16], strides = [1, 1]} : vector<2x64xf32> to vector<2x16xf32>
    %17 = vector.extract_strided_slice %14 {offsets = [0, 16], sizes = [2, 16], strides = [1, 1]} : vector<2x64xf32> to vector<2x16xf32>
    %18 = vector.extract_strided_slice %15 {offsets = [0, 32], sizes = [2, 16], strides = [1, 1]} : vector<2x64xf32> to vector<2x16xf32>
    %19 = vector.extract_strided_slice %14 {offsets = [0, 48], sizes = [2, 16], strides = [1, 1]} : vector<2x64xf32> to vector<2x16xf32>
    %20 = arith.mulf %17, %5 : vector<2x16xf32>
    %21 = arith.mulf %16, %18 : vector<2x16xf32>
    %22 = arith.addf %20, %21 : vector<2x16xf32>
    %23 = math.tanh %22 : vector<2x16xf32>
    %24 = arith.mulf %19, %23 : vector<2x16xf32>
    %c0_9 = arith.constant 0 : index
    %c6 = arith.constant 6 : index
    %c0_10 = arith.constant 0 : index
    %25 = vector.load %arg2[%c0_9, %c6, %c0_10] : memref<2x8x64xf32, #tpu.memory_space<vmem>>, vector<2x1x64xf32>
    %26 = vector.shape_cast %25 : vector<2x1x64xf32> to vector<2x64xf32>
    %cst_11 = arith.constant dense<0.000000e+00> : vector<2x64xf32>
    %27 = tpu.matmul %24, %3, %cst_11 {dimension_numbers = #tpu.dot_dimension_numbers<[1], [0], [0], [1], [0, 0, 1, 1], [], []>} : vector<2x16xf32>, vector<16x64xf32>, vector<2x64xf32> -> vector<2x64xf32>
    %28 = arith.addf %26, %27 : vector<2x64xf32>
    %29 = arith.negf %28 : vector<2x64xf32>
    %30 = math.exp %29 : vector<2x64xf32>
    %cst_12 = arith.constant 1.000000e+00 : f32
    %31 = vector.broadcast %cst_12 : f32 to vector<2x64xf32>
    %32 = arith.addf %31, %30 : vector<2x64xf32>
    %33 = arith.divf %31, %32 : vector<2x64xf32>
    %34 = math.tanh %28 : vector<2x64xf32>
    %35 = vector.extract_strided_slice %33 {offsets = [0, 0], sizes = [2, 16], strides = [1, 1]} : vector<2x64xf32> to vector<2x16xf32>
    %36 = vector.extract_strided_slice %33 {offsets = [0, 16], sizes = [2, 16], strides = [1, 1]} : vector<2x64xf32> to vector<2x16xf32>
    %37 = vector.extract_strided_slice %34 {offsets = [0, 32], sizes = [2, 16], strides = [1, 1]} : vector<2x64xf32> to vector<2x16xf32>
    %38 = vector.extract_strided_slice %33 {offsets = [0, 48], sizes = [2, 16], strides = [1, 1]} : vector<2x64xf32> to vector<2x16xf32>
    %39 = arith.mulf %36, %22 : vector<2x16xf32>
    %40 = arith.mulf %35, %37 : vector<2x16xf32>
    %41 = arith.addf %39, %40 : vector<2x16xf32>
    %42 = math.tanh %41 : vector<2x16xf32>
    %43 = arith.mulf %38, %42 : vector<2x16xf32>
    %c0_13 = arith.constant 0 : index
    %c5 = arith.constant 5 : index
    %c0_14 = arith.constant 0 : index
    %44 = vector.load %arg2[%c0_13, %c5, %c0_14] : memref<2x8x64xf32, #tpu.memory_space<vmem>>, vector<2x1x64xf32>
    %45 = vector.shape_cast %44 : vector<2x1x64xf32> to vector<2x64xf32>
    %cst_15 = arith.constant dense<0.000000e+00> : vector<2x64xf32>
    %46 = tpu.matmul %43, %3, %cst_15 {dimension_numbers = #tpu.dot_dimension_numbers<[1], [0], [0], [1], [0, 0, 1, 1], [], []>} : vector<2x16xf32>, vector<16x64xf32>, vector<2x64xf32> -> vector<2x64xf32>
    %47 = arith.addf %45, %46 : vector<2x64xf32>
    %48 = arith.negf %47 : vector<2x64xf32>
    %49 = math.exp %48 : vector<2x64xf32>
    %cst_16 = arith.constant 1.000000e+00 : f32
    %50 = vector.broadcast %cst_16 : f32 to vector<2x64xf32>
    %51 = arith.addf %50, %49 : vector<2x64xf32>
    %52 = arith.divf %50, %51 : vector<2x64xf32>
    %53 = math.tanh %47 : vector<2x64xf32>
    %54 = vector.extract_strided_slice %52 {offsets = [0, 0], sizes = [2, 16], strides = [1, 1]} : vector<2x64xf32> to vector<2x16xf32>
    %55 = vector.extract_strided_slice %52 {offsets = [0, 16], sizes = [2, 16], strides = [1, 1]} : vector<2x64xf32> to vector<2x16xf32>
    %56 = vector.extract_strided_slice %53 {offsets = [0, 32], sizes = [2, 16], strides = [1, 1]} : vector<2x64xf32> to vector<2x16xf32>
    %57 = vector.extract_strided_slice %52 {offsets = [0, 48], sizes = [2, 16], strides = [1, 1]} : vector<2x64xf32> to vector<2x16xf32>
    %58 = arith.mulf %55, %41 : vector<2x16xf32>
    %59 = arith.mulf %54, %56 : vector<2x16xf32>
    %60 = arith.addf %58, %59 : vector<2x16xf32>
    %61 = math.tanh %60 : vector<2x16xf32>
    %62 = arith.mulf %57, %61 : vector<2x16xf32>
    %c0_17 = arith.constant 0 : index
    %c4 = arith.constant 4 : index
    %c0_18 = arith.constant 0 : index
    %63 = vector.load %arg2[%c0_17, %c4, %c0_18] : memref<2x8x64xf32, #tpu.memory_space<vmem>>, vector<2x1x64xf32>
    %64 = vector.shape_cast %63 : vector<2x1x64xf32> to vector<2x64xf32>
    %cst_19 = arith.constant dense<0.000000e+00> : vector<2x64xf32>
    %65 = tpu.matmul %62, %3, %cst_19 {dimension_numbers = #tpu.dot_dimension_numbers<[1], [0], [0], [1], [0, 0, 1, 1], [], []>} : vector<2x16xf32>, vector<16x64xf32>, vector<2x64xf32> -> vector<2x64xf32>
    %66 = arith.addf %64, %65 : vector<2x64xf32>
    %67 = arith.negf %66 : vector<2x64xf32>
    %68 = math.exp %67 : vector<2x64xf32>
    %cst_20 = arith.constant 1.000000e+00 : f32
    %69 = vector.broadcast %cst_20 : f32 to vector<2x64xf32>
    %70 = arith.addf %69, %68 : vector<2x64xf32>
    %71 = arith.divf %69, %70 : vector<2x64xf32>
    %72 = math.tanh %66 : vector<2x64xf32>
    %73 = vector.extract_strided_slice %71 {offsets = [0, 0], sizes = [2, 16], strides = [1, 1]} : vector<2x64xf32> to vector<2x16xf32>
    %74 = vector.extract_strided_slice %71 {offsets = [0, 16], sizes = [2, 16], strides = [1, 1]} : vector<2x64xf32> to vector<2x16xf32>
    %75 = vector.extract_strided_slice %72 {offsets = [0, 32], sizes = [2, 16], strides = [1, 1]} : vector<2x64xf32> to vector<2x16xf32>
    %76 = vector.extract_strided_slice %71 {offsets = [0, 48], sizes = [2, 16], strides = [1, 1]} : vector<2x64xf32> to vector<2x16xf32>
    %77 = arith.mulf %74, %60 : vector<2x16xf32>
    %78 = arith.mulf %73, %75 : vector<2x16xf32>
    %79 = arith.addf %77, %78 : vector<2x16xf32>
    %80 = math.tanh %79 : vector<2x16xf32>
    %81 = arith.mulf %76, %80 : vector<2x16xf32>
    %c0_21 = arith.constant 0 : index
    %c3 = arith.constant 3 : index
    %c0_22 = arith.constant 0 : index
    %82 = vector.load %arg2[%c0_21, %c3, %c0_22] : memref<2x8x64xf32, #tpu.memory_space<vmem>>, vector<2x1x64xf32>
    %83 = vector.shape_cast %82 : vector<2x1x64xf32> to vector<2x64xf32>
    %cst_23 = arith.constant dense<0.000000e+00> : vector<2x64xf32>
    %84 = tpu.matmul %81, %3, %cst_23 {dimension_numbers = #tpu.dot_dimension_numbers<[1], [0], [0], [1], [0, 0, 1, 1], [], []>} : vector<2x16xf32>, vector<16x64xf32>, vector<2x64xf32> -> vector<2x64xf32>
    %85 = arith.addf %83, %84 : vector<2x64xf32>
    %86 = arith.negf %85 : vector<2x64xf32>
    %87 = math.exp %86 : vector<2x64xf32>
    %cst_24 = arith.constant 1.000000e+00 : f32
    %88 = vector.broadcast %cst_24 : f32 to vector<2x64xf32>
    %89 = arith.addf %88, %87 : vector<2x64xf32>
    %90 = arith.divf %88, %89 : vector<2x64xf32>
    %91 = math.tanh %85 : vector<2x64xf32>
    %92 = vector.extract_strided_slice %90 {offsets = [0, 0], sizes = [2, 16], strides = [1, 1]} : vector<2x64xf32> to vector<2x16xf32>
    %93 = vector.extract_strided_slice %90 {offsets = [0, 16], sizes = [2, 16], strides = [1, 1]} : vector<2x64xf32> to vector<2x16xf32>
    %94 = vector.extract_strided_slice %91 {offsets = [0, 32], sizes = [2, 16], strides = [1, 1]} : vector<2x64xf32> to vector<2x16xf32>
    %95 = vector.extract_strided_slice %90 {offsets = [0, 48], sizes = [2, 16], strides = [1, 1]} : vector<2x64xf32> to vector<2x16xf32>
    %96 = arith.mulf %93, %79 : vector<2x16xf32>
    %97 = arith.mulf %92, %94 : vector<2x16xf32>
    %98 = arith.addf %96, %97 : vector<2x16xf32>
    %99 = math.tanh %98 : vector<2x16xf32>
    %100 = arith.mulf %95, %99 : vector<2x16xf32>
    %c0_25 = arith.constant 0 : index
    %c2 = arith.constant 2 : index
    %c0_26 = arith.constant 0 : index
    %101 = vector.load %arg2[%c0_25, %c2, %c0_26] : memref<2x8x64xf32, #tpu.memory_space<vmem>>, vector<2x1x64xf32>
    %102 = vector.shape_cast %101 : vector<2x1x64xf32> to vector<2x64xf32>
    %cst_27 = arith.constant dense<0.000000e+00> : vector<2x64xf32>
    %103 = tpu.matmul %100, %3, %cst_27 {dimension_numbers = #tpu.dot_dimension_numbers<[1], [0], [0], [1], [0, 0, 1, 1], [], []>} : vector<2x16xf32>, vector<16x64xf32>, vector<2x64xf32> -> vector<2x64xf32>
    %104 = arith.addf %102, %103 : vector<2x64xf32>
    %105 = arith.negf %104 : vector<2x64xf32>
    %106 = math.exp %105 : vector<2x64xf32>
    %cst_28 = arith.constant 1.000000e+00 : f32
    %107 = vector.broadcast %cst_28 : f32 to vector<2x64xf32>
    %108 = arith.addf %107, %106 : vector<2x64xf32>
    %109 = arith.divf %107, %108 : vector<2x64xf32>
    %110 = math.tanh %104 : vector<2x64xf32>
    %111 = vector.extract_strided_slice %109 {offsets = [0, 0], sizes = [2, 16], strides = [1, 1]} : vector<2x64xf32> to vector<2x16xf32>
    %112 = vector.extract_strided_slice %109 {offsets = [0, 16], sizes = [2, 16], strides = [1, 1]} : vector<2x64xf32> to vector<2x16xf32>
    %113 = vector.extract_strided_slice %110 {offsets = [0, 32], sizes = [2, 16], strides = [1, 1]} : vector<2x64xf32> to vector<2x16xf32>
    %114 = vector.extract_strided_slice %109 {offsets = [0, 48], sizes = [2, 16], strides = [1, 1]} : vector<2x64xf32> to vector<2x16xf32>
    %115 = arith.mulf %112, %98 : vector<2x16xf32>
    %116 = arith.mulf %111, %113 : vector<2x16xf32>
    %117 = arith.addf %115, %116 : vector<2x16xf32>
    %118 = math.tanh %117 : vector<2x16xf32>
    %119 = arith.mulf %114, %118 : vector<2x16xf32>
    %c0_29 = arith.constant 0 : index
    %c1 = arith.constant 1 : index
    %c0_30 = arith.constant 0 : index
    %120 = vector.load %arg2[%c0_29, %c1, %c0_30] : memref<2x8x64xf32, #tpu.memory_space<vmem>>, vector<2x1x64xf32>
    %121 = vector.shape_cast %120 : vector<2x1x64xf32> to vector<2x64xf32>
    %cst_31 = arith.constant dense<0.000000e+00> : vector<2x64xf32>
    %122 = tpu.matmul %119, %3, %cst_31 {dimension_numbers = #tpu.dot_dimension_numbers<[1], [0], [0], [1], [0, 0, 1, 1], [], []>} : vector<2x16xf32>, vector<16x64xf32>, vector<2x64xf32> -> vector<2x64xf32>
    %123 = arith.addf %121, %122 : vector<2x64xf32>
    %124 = arith.negf %123 : vector<2x64xf32>
    %125 = math.exp %124 : vector<2x64xf32>
    %cst_32 = arith.constant 1.000000e+00 : f32
    %126 = vector.broadcast %cst_32 : f32 to vector<2x64xf32>
    %127 = arith.addf %126, %125 : vector<2x64xf32>
    %128 = arith.divf %126, %127 : vector<2x64xf32>
    %129 = math.tanh %123 : vector<2x64xf32>
    %130 = vector.extract_strided_slice %128 {offsets = [0, 0], sizes = [2, 16], strides = [1, 1]} : vector<2x64xf32> to vector<2x16xf32>
    %131 = vector.extract_strided_slice %128 {offsets = [0, 16], sizes = [2, 16], strides = [1, 1]} : vector<2x64xf32> to vector<2x16xf32>
    %132 = vector.extract_strided_slice %129 {offsets = [0, 32], sizes = [2, 16], strides = [1, 1]} : vector<2x64xf32> to vector<2x16xf32>
    %133 = vector.extract_strided_slice %128 {offsets = [0, 48], sizes = [2, 16], strides = [1, 1]} : vector<2x64xf32> to vector<2x16xf32>
    %134 = arith.mulf %131, %117 : vector<2x16xf32>
    %135 = arith.mulf %130, %132 : vector<2x16xf32>
    %136 = arith.addf %134, %135 : vector<2x16xf32>
    %137 = math.tanh %136 : vector<2x16xf32>
    %138 = arith.mulf %133, %137 : vector<2x16xf32>
    %c0_33 = arith.constant 0 : index
    %c0_34 = arith.constant 0 : index
    %c0_35 = arith.constant 0 : index
    %139 = vector.load %arg2[%c0_33, %c0_34, %c0_35] : memref<2x8x64xf32, #tpu.memory_space<vmem>>, vector<2x1x64xf32>
    %140 = vector.shape_cast %139 : vector<2x1x64xf32> to vector<2x64xf32>
    %cst_36 = arith.constant dense<0.000000e+00> : vector<2x64xf32>
    %141 = tpu.matmul %138, %3, %cst_36 {dimension_numbers = #tpu.dot_dimension_numbers<[1], [0], [0], [1], [0, 0, 1, 1], [], []>} : vector<2x16xf32>, vector<16x64xf32>, vector<2x64xf32> -> vector<2x64xf32>
    %142 = arith.addf %140, %141 : vector<2x64xf32>
    %143 = arith.negf %142 : vector<2x64xf32>
    %144 = math.exp %143 : vector<2x64xf32>
    %cst_37 = arith.constant 1.000000e+00 : f32
    %145 = vector.broadcast %cst_37 : f32 to vector<2x64xf32>
    %146 = arith.addf %145, %144 : vector<2x64xf32>
    %147 = arith.divf %145, %146 : vector<2x64xf32>
    %148 = math.tanh %142 : vector<2x64xf32>
    %149 = vector.extract_strided_slice %147 {offsets = [0, 0], sizes = [2, 16], strides = [1, 1]} : vector<2x64xf32> to vector<2x16xf32>
    %150 = vector.extract_strided_slice %147 {offsets = [0, 16], sizes = [2, 16], strides = [1, 1]} : vector<2x64xf32> to vector<2x16xf32>
    %151 = vector.extract_strided_slice %148 {offsets = [0, 32], sizes = [2, 16], strides = [1, 1]} : vector<2x64xf32> to vector<2x16xf32>
    %152 = vector.extract_strided_slice %147 {offsets = [0, 48], sizes = [2, 16], strides = [1, 1]} : vector<2x64xf32> to vector<2x16xf32>
    %153 = arith.mulf %150, %136 : vector<2x16xf32>
    %154 = arith.mulf %149, %151 : vector<2x16xf32>
    %155 = arith.addf %153, %154 : vector<2x16xf32>
    %156 = math.tanh %155 : vector<2x16xf32>
    %157 = arith.mulf %152, %156 : vector<2x16xf32>
    %c0_38 = arith.constant 0 : index
    %c0_39 = arith.constant 0 : index
    %158 = vector.load %arg7[%c0_38, %c0_39] : memref<2x16xf32, #tpu.memory_space<vmem>>, vector<2x16xf32>
    tpu.vector_store %arg7[%c0_38, %c0_39], %157 {strides = array<i32>} : memref<2x16xf32, #tpu.memory_space<vmem>>, vector<2x16xf32>,
    %c0_40 = arith.constant 0 : index
    %c0_41 = arith.constant 0 : index
    %159 = vector.load %arg8[%c0_40, %c0_41] : memref<2x16xf32, #tpu.memory_space<vmem>>, vector<2x16xf32>
    tpu.vector_store %arg8[%c0_40, %c0_41], %155 {strides = array<i32>} : memref<2x16xf32, #tpu.memory_space<vmem>>, vector<2x16xf32>,
    %c0_i32_42 = arith.constant 0 : i32
    %160 = arith.cmpi eq, %arg1, %c0_i32_42 : i32
    %161 = arith.extui %160 : i1 to i32
    %c0_i32_43 = arith.constant 0 : i32
    %162 = arith.cmpi ne, %161, %c0_i32_43 : i32
    scf.if %162 {
      %c0_44 = arith.constant 0 : index
      %c0_45 = arith.constant 0 : index
      %163 = vector.load %arg7[%c0_44, %c0_45] : memref<2x16xf32, #tpu.memory_space<vmem>>, vector<2x16xf32>
      %c0_46 = arith.constant 0 : index
      %c0_47 = arith.constant 0 : index
      %164 = vector.load %arg4[%c0_46, %c0_47] : memref<16x6xf32, #tpu.memory_space<vmem>>, vector<16x6xf32>
      %cst_48 = arith.constant dense<0.000000e+00> : vector<2x6xf32>
      %165 = tpu.matmul %163, %164, %cst_48 {dimension_numbers = #tpu.dot_dimension_numbers<[1], [0], [0], [1], [0, 0, 1, 1], [], []>} : vector<2x16xf32>, vector<16x6xf32>, vector<2x6xf32> -> vector<2x6xf32>
      %c0_49 = arith.constant 0 : index
      %c0_50 = arith.constant 0 : index
      %166 = vector.load %arg5[%c0_49, %c0_50] : memref<1x6xf32, #tpu.memory_space<vmem>>, vector<1x6xf32>
      %167 = vector.broadcast %166 : vector<1x6xf32> to vector<2x6xf32>
      %168 = arith.addf %165, %167 : vector<2x6xf32>
      %cst_51 = arith.constant 0.000000e+00 : f32
      %169 = vector.broadcast %cst_51 : f32 to vector<2x6xf32>
      %170 = arith.maximumf %168, %169 : vector<2x6xf32>
      %c0_52 = arith.constant 0 : index
      %c0_53 = arith.constant 0 : index
      %171 = vector.load %arg6[%c0_52, %c0_53] : memref<2x6xf32, #tpu.memory_space<vmem>>, vector<2x6xf32>
      tpu.vector_store %arg6[%c0_52, %c0_53], %170 {strides = array<i32>} : memref<2x6xf32, #tpu.memory_space<vmem>>, vector<2x6xf32>,
    } else {
    }
    return
  }
  func.func @transform_0(%arg0: i32, %arg1: i32) -> (i32, i32, i32) {
    %c0_i32 = arith.constant 0 : i32
    %0 = arith.subi %c0_i32, %arg1 : i32
    %c0_i32_0 = arith.constant 0 : i32
    %c0_i32_1 = arith.constant 0 : i32
    return %arg0, %0, %c0_i32_0 : i32, i32, i32
  }
  func.func @transform_1(%arg0: i32, %arg1: i32) -> (i32, i32) {
    %c0_i32 = arith.constant 0 : i32
    %c0_i32_0 = arith.constant 0 : i32
    %c0_i32_1 = arith.constant 0 : i32
    return %c0_i32, %c0_i32_0 : i32, i32
  }
  func.func @transform_2(%arg0: i32, %arg1: i32) -> (i32, i32) {
    %c0_i32 = arith.constant 0 : i32
    %c0_i32_0 = arith.constant 0 : i32
    %c0_i32_1 = arith.constant 0 : i32
    return %c0_i32, %c0_i32_0 : i32, i32
  }
  func.func @transform_3(%arg0: i32, %arg1: i32) -> (i32, i32) {
    %c0_i32 = arith.constant 0 : i32
    %c0_i32_0 = arith.constant 0 : i32
    %c0_i32_1 = arith.constant 0 : i32
    return %c0_i32, %c0_i32_0 : i32, i32
  }
  func.func @transform_4(%arg0: i32, %arg1: i32) -> (i32, i32) {
    %c0_i32 = arith.constant 0 : i32
    %c0_i32_0 = arith.constant 0 : i32
    return %arg0, %c0_i32 : i32, i32
  }
}

</mosaic_0001>

<llo_original>
// kernel: lstm_net_forward.2
$region0: #{lstm_net_forward.2}
  #allocation0 [shape = 'u32[]', space=smem, size = 0x4, offset = 0x4, fixed_abs, tag = 'smem constant byte address 0x4 - core index']
  #allocation1 [shape = 'u32[144,128]{1,0:T(1,128)}', space=vmem, size = 0x12000, scoped, tag = 'internal scratch']
  %s0 = inlined_call_operand.vmem [shape: f32[16,768], index: 0, kind: input, shape index: {}]
  %s1 = inlined_call_operand.vmem [shape: f32[768,64], index: 1, kind: input, shape index: {}]
  %s2 = inlined_call_operand.vmem [shape: f32[1,64], index: 2, kind: input, shape index: {}]
  %s3 = inlined_call_operand.vmem [shape: f32[16,64], index: 3, kind: output, shape index: {}]
  %s4 = sld [smem:[#allocation0]]
  $region22: #{lstm_net_forward.2} parent=0
    _
  %s6 = ssub.s32 1, %s4
  %s7 = scalar_select 0, %s6, %s4
  // Predicated region
  $region2: #{lstm_net_forward.2} parent=0 // pred_check
    _
  $region3: #{lstm_net_forward.2} parent=0 // pred_check_branch
    %9 = sbr.rel (0) target = $region5
  $region4: #{lstm_net_forward.2} parent=0 // pred_region
    _
  $region5: #{lstm_net_forward.2} parent=0 // pred_fallthru
    _
  // Predicated region
  $region6: #{lstm_net_forward.2} parent=0 // pred_check
    _
  $region7: #{lstm_net_forward.2} parent=0 // pred_check_branch
    %11 = sbr.rel (0) target = $region9
  $region8: #{lstm_net_forward.2} parent=0 // pred_region
    _
  $region9: #{lstm_net_forward.2} parent=0 // pred_fallthru
    _
  // Predicated region
  $region10: #{lstm_net_forward.2} parent=0 // pred_check
    _
  $region11: #{lstm_net_forward.2} parent=0 // pred_check_branch
    %13 = sbr.rel (0) target = $region13
  $region12: #{lstm_net_forward.2} parent=0 // pred_region
    _
  $region13: #{lstm_net_forward.2} parent=0 // pred_fallthru
    _
  %v14 = vld [vmem:[%s0] sm:$0xff]
  %v15 = vld [vmem:[%s0 + $0x8] sm:$0xff]
  %v16 = vld [vmem:[%s0 + $0x10] sm:$0xff]
  %v17 = vld [vmem:[%s0 + $0x18] sm:$0xff]
  %v18 = vld [vmem:[%s0 + $0x20] sm:$0xff]
  %v19 = vld [vmem:[%s0 + $0x28] sm:$0xff]
  %v20 = vld [vmem:[%s0 + $0x30] sm:$0xff]
  %v21 = vld [vmem:[%s0 + $0x38] sm:$0xff]
  %v22 = vld [vmem:[%s0 + $0x40] sm:$0xff]
  %v23 = vld [vmem:[%s0 + $0x48] sm:$0xff]
  %v24 = vld [vmem:[%s0 + $0x50] sm:$0xff]
  %v25 = vld [vmem:[%s0 + $0x58] sm:$0xff]
  %v26 = vld [vmem:[%s1] sm:$0xff]
  %v27 = vld [vmem:[%s1 + $0x8] sm:$0xff]
  %v28 = vld [vmem:[%s1 + $0x10] sm:$0xff]
  %v29 = vld [vmem:[%s1 + $0x18] sm:$0xff]
  %v30 = vld [vmem:[%s1 + $0x20] sm:$0xff]
  %v31 = vld [vmem:[%s1 + $0x28] sm:$0xff]
  %v32 = vld [vmem:[%s1 + $0x30] sm:$0xff]
  %v33 = vld [vmem:[%s1 + $0x38] sm:$0xff]
  %v34 = vld [vmem:[%s1 + $0x40] sm:$0xff]
  %v35 = vld [vmem:[%s1 + $0x48] sm:$0xff]
  %v36 = vld [vmem:[%s1 + $0x50] sm:$0xff]
  %v37 = vld [vmem:[%s1 + $0x58] sm:$0xff]
  %v38 = vld [vmem:[%s1 + $0x60] sm:$0xff]
  %v39 = vld [vmem:[%s1 + $0x68] sm:$0xff]
  %v40 = vld [vmem:[%s1 + $0x70] sm:$0xff]
  %v41 = vld [vmem:[%s1 + $0x78] sm:$0xff]
  %v42 = vld [vmem:[%s1 + $0x80] sm:$0xff]
  %v43 = vld [vmem:[%s1 + $0x88] sm:$0xff]
  %v44 = vld [vmem:[%s1 + $0x90] sm:$0xff]
  %v45 = vld [vmem:[%s1 + $0x98] sm:$0xff]
  %v46 = vld [vmem:[%s1 + $0xa0] sm:$0xff]
  %v47 = vld [vmem:[%s1 + $0xa8] sm:$0xff]
  %v48 = vld [vmem:[%s1 + $0xb0] sm:$0xff]
  %v49 = vld [vmem:[%s1 + $0xb8] sm:$0xff]
  %v50 = vld [vmem:[%s1 + $0xc0] sm:$0xff]
  %v51 = vld [vmem:[%s1 + $0xc8] sm:$0xff]
  %v52 = vld [vmem:[%s1 + $0xd0] sm:$0xff]
  %v53 = vld [vmem:[%s1 + $0xd8] sm:$0xff]
  %v54 = vld [vmem:[%s1 + $0xe0] sm:$0xff]
  %v55 = vld [vmem:[%s1 + $0xe8] sm:$0xff]
  %v56 = vld [vmem:[%s1 + $0xf0] sm:$0xff]
  %v57 = vld [vmem:[%s1 + $0xf8] sm:$0xff]
  %v58 = vld [vmem:[%s1 + $0x100] sm:$0xff]
  %v59 = vld [vmem:[%s1 + $0x108] sm:$0xff]
  %v60 = vld [vmem:[%s1 + $0x110] sm:$0xff]
  %v61 = vld [vmem:[%s1 + $0x118] sm:$0xff]
  %v62 = vld [vmem:[%s1 + $0x120] sm:$0xff]
  %v63 = vld [vmem:[%s1 + $0x128] sm:$0xff]
  %v64 = vld [vmem:[%s1 + $0x130] sm:$0xff]
  %v65 = vld [vmem:[%s1 + $0x138] sm:$0xff]
  %v66 = vld [vmem:[%s1 + $0x140] sm:$0xff]
  %v67 = vld [vmem:[%s1 + $0x148] sm:$0xff]
  %v68 = vld [vmem:[%s1 + $0x150] sm:$0xff]
  %v69 = vld [vmem:[%s1 + $0x158] sm:$0xff]
  %v70 = vld [vmem:[%s1 + $0x160] sm:$0xff]
  %v71 = vld [vmem:[%s1 + $0x168] sm:$0xff]
  %v72 = vld [vmem:[%s1 + $0x170] sm:$0xff]
  %v73 = vld [vmem:[%s1 + $0x178] sm:$0xff]
  %v74 = vld [vmem:[%s1 + $0x180] sm:$0xff]
  %v75 = vld [vmem:[%s1 + $0x188] sm:$0xff]
  %v76 = vld [vmem:[%s1 + $0x190] sm:$0xff]
  %v77 = vld [vmem:[%s1 + $0x198] sm:$0xff]
  %v78 = vld [vmem:[%s1 + $0x1a0] sm:$0xff]
  %v79 = vld [vmem:[%s1 + $0x1a8] sm:$0xff]
  %v80 = vld [vmem:[%s1 + $0x1b0] sm:$0xff]
  %v81 = vld [vmem:[%s1 + $0x1b8] sm:$0xff]
  %v82 = vld [vmem:[%s1 + $0x1c0] sm:$0xff]
  %v83 = vld [vmem:[%s1 + $0x1c8] sm:$0xff]
  %v84 = vld [vmem:[%s1 + $0x1d0] sm:$0xff]
  %v85 = vld [vmem:[%s1 + $0x1d8] sm:$0xff]
  %v86 = vld [vmem:[%s1 + $0x1e0] sm:$0xff]
  %v87 = vld [vmem:[%s1 + $0x1e8] sm:$0xff]
  %v88 = vld [vmem:[%s1 + $0x1f0] sm:$0xff]
  %v89 = vld [vmem:[%s1 + $0x1f8] sm:$0xff]
  %v90 = vld [vmem:[%s1 + $0x200] sm:$0xff]
  %v91 = vld [vmem:[%s1 + $0x208] sm:$0xff]
  %v92 = vld [vmem:[%s1 + $0x210] sm:$0xff]
  %v93 = vld [vmem:[%s1 + $0x218] sm:$0xff]
  %v94 = vld [vmem:[%s1 + $0x220] sm:$0xff]
  %v95 = vld [vmem:[%s1 + $0x228] sm:$0xff]
  %v96 = vld [vmem:[%s1 + $0x230] sm:$0xff]
  %v97 = vld [vmem:[%s1 + $0x238] sm:$0xff]
  %v98 = vld [vmem:[%s1 + $0x240] sm:$0xff]
  %v99 = vld [vmem:[%s1 + $0x248] sm:$0xff]
  %v100 = vld [vmem:[%s1 + $0x250] sm:$0xff]
  %v101 = vld [vmem:[%s1 + $0x258] sm:$0xff]
  %v102 = vld [vmem:[%s1 + $0x260] sm:$0xff]
  %v103 = vld [vmem:[%s1 + $0x268] sm:$0xff]
  %v104 = vld [vmem:[%s1 + $0x270] sm:$0xff]
  %v105 = vld [vmem:[%s1 + $0x278] sm:$0xff]
  %v106 = vld [vmem:[%s1 + $0x280] sm:$0xff]
  %v107 = vld [vmem:[%s1 + $0x288] sm:$0xff]
  %v108 = vld [vmem:[%s1 + $0x290] sm:$0xff]
  %v109 = vld [vmem:[%s1 + $0x298] sm:$0xff]
  %v110 = vld [vmem:[%s1 + $0x2a0] sm:$0xff]
  %v111 = vld [vmem:[%s1 + $0x2a8] sm:$0xff]
  %v112 = vld [vmem:[%s1 + $0x2b0] sm:$0xff]
  %v113 = vld [vmem:[%s1 + $0x2b8] sm:$0xff]
  %v114 = vld [vmem:[%s1 + $0x2c0] sm:$0xff]
  %v115 = vld [vmem:[%s1 + $0x2c8] sm:$0xff]
  %v116 = vld [vmem:[%s1 + $0x2d0] sm:$0xff]
  %v117 = vld [vmem:[%s1 + $0x2d8] sm:$0xff]
  %v118 = vld [vmem:[%s1 + $0x2e0] sm:$0xff]
  %v119 = vld [vmem:[%s1 + $0x2e8] sm:$0xff]
  %v120 = vld [vmem:[%s1 + $0x2f0] sm:$0xff]
  %v121 = vld [vmem:[%s1 + $0x2f8] sm:$0xff]
  %v122 = vld [vmem:[%s2] sm:$0x1]
  %v124 = vlaneseq
  %v125 = vshrl.u32 %v124, 7
  %v126 = vsub.s32 0, %v125
  %v127 = vrot.slane %v122, %v126
  %129 = vmatprep.subr.mxu0 0.0
  %130 = vmatpush1.msra.mxu0 %v41
  %131 = vmatprep.subr.mxu0 0.0
  %132 = vmatpush1.msra.mxu0 %v40
  %133 = vmatprep.subr.mxu0 0.0
  %134 = vmatpush1.msra.mxu0 %v39
  %135 = vmatprep.subr.mxu0 0.0
  %136 = vmatpush1.msra.mxu0 %v38
  %137 = vmatprep.subr.mxu0 0.0
  %138 = vmatpush1.msra.mxu0 %v37
  %139 = vmatprep.subr.mxu0 0.0
  %140 = vmatpush1.msra.mxu0 %v36
  %141 = vmatprep.subr.mxu0 0.0
  %142 = vmatpush1.msra.mxu0 %v35
  %143 = vmatprep.subr.mxu0 0.0
  %144 = vmatpush1.msra.mxu0 %v34
  %145 = vmatprep.subr.mxu0 0.0
  %146 = vmatpush1.msra.mxu0 %v33
  %147 = vmatprep.subr.mxu0 0.0
  %148 = vmatpush1.msra.mxu0 %v32
  %149 = vmatprep.subr.mxu0 0.0
  %150 = vmatpush1.msra.mxu0 %v31
  %151 = vmatprep.subr.mxu0 0.0
  %152 = vmatpush1.msra.mxu0 %v30
  %153 = vmatprep.subr.mxu0 0.0
  %154 = vmatpush1.msra.mxu0 %v29
  %155 = vmatprep.subr.mxu0 0.0
  %156 = vmatpush1.msra.mxu0 %v28
  %157 = vmatprep.subr.mxu0 0.0
  %158 = vmatpush1.msra.mxu0 %v27
  %159 = vmatprep.subr.mxu0 0.0
  %160 = vmatpush1.msra.mxu0 %v26
  %161 = vmatprep.subr.mxu0 0.0
  %162 = vmatpush2.msra.mxu0 %v57
  %163 = vmatprep.subr.mxu0 0.0
  %164 = vmatpush2.msra.mxu0 %v56
  %165 = vmatprep.subr.mxu0 0.0
  %166 = vmatpush2.msra.mxu0 %v55
  %167 = vmatprep.subr.mxu0 0.0
  %168 = vmatpush2.msra.mxu0 %v54
  %169 = vmatprep.subr.mxu0 0.0
  %170 = vmatpush2.msra.mxu0 %v53
  %171 = vmatprep.subr.mxu0 0.0
  %172 = vmatpush2.msra.mxu0 %v52
  %173 = vmatprep.subr.mxu0 0.0
  %174 = vmatpush2.msra.mxu0 %v51
  %175 = vmatprep.subr.mxu0 0.0
  %176 = vmatpush2.msra.mxu0 %v50
  %177 = vmatprep.subr.mxu0 0.0
  %178 = vmatpush2.msra.mxu0 %v49
  %179 = vmatprep.subr.mxu0 0.0
  %180 = vmatpush2.msra.mxu0 %v48
  %181 = vmatprep.subr.mxu0 0.0
  %182 = vmatpush2.msra.mxu0 %v47
  %183 = vmatprep.subr.mxu0 0.0
  %184 = vmatpush2.msra.mxu0 %v46
  %185 = vmatprep.subr.mxu0 0.0
  %186 = vmatpush2.msra.mxu0 %v45
  %187 = vmatprep.subr.mxu0 0.0
  %188 = vmatpush2.msra.mxu0 %v44
  %189 = vmatprep.subr.mxu0 0.0
  %190 = vmatpush2.msra.mxu0 %v43
  %191 = vmatprep.subr.mxu0 0.0
  %192 = vmatpush2.msra.mxu0 %v42
  %193 = vmatprep.mubr.f32.mxu0 %v15
  %194 = vmatmul.mubr.f32.gmra.mxu0 %v14
  %v195 = vpop.f32.mrf.mxu0
  %v196 = vadd.f32 %v127, %v195
  %v197 = vpop.f32.mrf.mxu0
  %198 = vmatprep.mubr.f32.mxu0 %v21
  %199 = vmatmul.mubr.f32.gmra.mxu0 %v20
  %v200 = vpop.f32.mrf.mxu0
  %v201 = vadd.f32 %v127, %v200
  %v202 = vpop.f32.mrf.mxu0
  %203 = vdwg.mxu0
  %204 = vmatprep.subr.mxu0 0.0
  %205 = vmatpush1.msra.mxu0 %v73
  %206 = vmatprep.subr.mxu0 0.0
  %207 = vmatpush1.msra.mxu0 %v72
  %208 = vmatprep.subr.mxu0 0.0
  %209 = vmatpush1.msra.mxu0 %v71
  %210 = vmatprep.subr.mxu0 0.0
  %211 = vmatpush1.msra.mxu0 %v70
  %212 = vmatprep.subr.mxu0 0.0
  %213 = vmatpush1.msra.mxu0 %v69
  %214 = vmatprep.subr.mxu0 0.0
  %215 = vmatpush1.msra.mxu0 %v68
  %216 = vmatprep.subr.mxu0 0.0
  %217 = vmatpush1.msra.mxu0 %v67
  %218 = vmatprep.subr.mxu0 0.0
  %219 = vmatpush1.msra.mxu0 %v66
  %220 = vmatprep.subr.mxu0 0.0
  %221 = vmatpush1.msra.mxu0 %v65
  %222 = vmatprep.subr.mxu0 0.0
  %223 = vmatpush1.msra.mxu0 %v64
  %224 = vmatprep.subr.mxu0 0.0
  %225 = vmatpush1.msra.mxu0 %v63
  %226 = vmatprep.subr.mxu0 0.0
  %227 = vmatpush1.msra.mxu0 %v62
  %228 = vmatprep.subr.mxu0 0.0
  %229 = vmatpush1.msra.mxu0 %v61
  %230 = vmatprep.subr.mxu0 0.0
  %231 = vmatpush1.msra.mxu0 %v60
  %232 = vmatprep.subr.mxu0 0.0
  %233 = vmatpush1.msra.mxu0 %v59
  %234 = vmatprep.subr.mxu0 0.0
  %235 = vmatpush1.msra.mxu0 %v58
  %236 = vmatprep.subr.mxu0 0.0
  %237 = vmatpush2.msra.mxu0 %v89
  %238 = vmatprep.subr.mxu0 0.0
  %239 = vmatpush2.msra.mxu0 %v88
  %240 = vmatprep.subr.mxu0 0.0
  %241 = vmatpush2.msra.mxu0 %v87
  %242 = vmatprep.subr.mxu0 0.0
  %243 = vmatpush2.msra.mxu0 %v86
  %244 = vmatprep.subr.mxu0 0.0
  %245 = vmatpush2.msra.mxu0 %v85
  %246 = vmatprep.subr.mxu0 0.0
  %247 = vmatpush2.msra.mxu0 %v84
  %248 = vmatprep.subr.mxu0 0.0
  %249 = vmatpush2.msra.mxu0 %v83
  %250 = vmatprep.subr.mxu0 0.0
  %251 = vmatpush2.msra.mxu0 %v82
  %252 = vmatprep.subr.mxu0 0.0
  %253 = vmatpush2.msra.mxu0 %v81
  %254 = vmatprep.subr.mxu0 0.0
  %255 = vmatpush2.msra.mxu0 %v80
  %256 = vmatprep.subr.mxu0 0.0
  %257 = vmatpush2.msra.mxu0 %v79
  %258 = vmatprep.subr.mxu0 0.0
  %259 = vmatpush2.msra.mxu0 %v78
  %260 = vmatprep.subr.mxu0 0.0
  %261 = vmatpush2.msra.mxu0 %v77
  %262 = vmatprep.subr.mxu0 0.0
  %263 = vmatpush2.msra.mxu0 %v76
  %264 = vmatprep.subr.mxu0 0.0
  %265 = vmatpush2.msra.mxu0 %v75
  %266 = vmatprep.subr.mxu0 0.0
  %267 = vmatpush2.msra.mxu0 %v74
  %268 = vmatprep.mubr.f32.mxu0 %v17
  %269 = vmatmul.mubr.f32.gmra.mxu0 %v16
  %v270 = vpop.f32.mrf.mxu0
  %v271 = vadd.f32 %v196, %v270
  %v272 = vpop.f32.mrf.mxu0
  %273 = vmatprep.mubr.f32.mxu0 %v23
  %274 = vmatmul.mubr.f32.gmra.mxu0 %v22
  %v275 = vpop.f32.mrf.mxu0
  %v276 = vadd.f32 %v201, %v275
  %v277 = vpop.f32.mrf.mxu0
  %278 = vdwg.mxu0
  %279 = vmatprep.subr.mxu0 0.0
  %280 = vmatpush1.msra.mxu0 %v105
  %281 = vmatprep.subr.mxu0 0.0
  %282 = vmatpush1.msra.mxu0 %v104
  %283 = vmatprep.subr.mxu0 0.0
  %284 = vmatpush1.msra.mxu0 %v103
  %285 = vmatprep.subr.mxu0 0.0
  %286 = vmatpush1.msra.mxu0 %v102
  %287 = vmatprep.subr.mxu0 0.0
  %288 = vmatpush1.msra.mxu0 %v101
  %289 = vmatprep.subr.mxu0 0.0
  %290 = vmatpush1.msra.mxu0 %v100
  %291 = vmatprep.subr.mxu0 0.0
  %292 = vmatpush1.msra.mxu0 %v99
  %293 = vmatprep.subr.mxu0 0.0
  %294 = vmatpush1.msra.mxu0 %v98
  %295 = vmatprep.subr.mxu0 0.0
  %296 = vmatpush1.msra.mxu0 %v97
  %297 = vmatprep.subr.mxu0 0.0
  %298 = vmatpush1.msra.mxu0 %v96
  %299 = vmatprep.subr.mxu0 0.0
  %300 = vmatpush1.msra.mxu0 %v95
  %301 = vmatprep.subr.mxu0 0.0
  %302 = vmatpush1.msra.mxu0 %v94
  %303 = vmatprep.subr.mxu0 0.0
  %304 = vmatpush1.msra.mxu0 %v93
  %305 = vmatprep.subr.mxu0 0.0
  %306 = vmatpush1.msra.mxu0 %v92
  %307 = vmatprep.subr.mxu0 0.0
  %308 = vmatpush1.msra.mxu0 %v91
  %309 = vmatprep.subr.mxu0 0.0
  %310 = vmatpush1.msra.mxu0 %v90
  %311 = vmatprep.subr.mxu0 0.0
  %312 = vmatpush2.msra.mxu0 %v121
  %313 = vmatprep.subr.mxu0 0.0
  %314 = vmatpush2.msra.mxu0 %v120
  %315 = vmatprep.subr.mxu0 0.0
  %316 = vmatpush2.msra.mxu0 %v119
  %317 = vmatprep.subr.mxu0 0.0
  %318 = vmatpush2.msra.mxu0 %v118
  %319 = vmatprep.subr.mxu0 0.0
  %320 = vmatpush2.msra.mxu0 %v117
  %321 = vmatprep.subr.mxu0 0.0
  %322 = vmatpush2.msra.mxu0 %v116
  %323 = vmatprep.subr.mxu0 0.0
  %324 = vmatpush2.msra.mxu0 %v115
  %325 = vmatprep.subr.mxu0 0.0
  %326 = vmatpush2.msra.mxu0 %v114
  %327 = vmatprep.subr.mxu0 0.0
  %328 = vmatpush2.msra.mxu0 %v113
  %329 = vmatprep.subr.mxu0 0.0
  %330 = vmatpush2.msra.mxu0 %v112
  %331 = vmatprep.subr.mxu0 0.0
  %332 = vmatpush2.msra.mxu0 %v111
  %333 = vmatprep.subr.mxu0 0.0
  %334 = vmatpush2.msra.mxu0 %v110
  %335 = vmatprep.subr.mxu0 0.0
  %336 = vmatpush2.msra.mxu0 %v109
  %337 = vmatprep.subr.mxu0 0.0
  %338 = vmatpush2.msra.mxu0 %v108
  %339 = vmatprep.subr.mxu0 0.0
  %340 = vmatpush2.msra.mxu0 %v107
  %341 = vmatprep.subr.mxu0 0.0
  %342 = vmatpush2.msra.mxu0 %v106
  %343 = vmatprep.mubr.f32.mxu0 %v19
  %344 = vmatmul.mubr.f32.gmra.mxu0 %v18
  %v345 = vpop.f32.mrf.mxu0
  %v346 = vadd.f32 %v271, %v345
  %v347 = vpop.f32.mrf.mxu0
  %348 = vmatprep.mubr.f32.mxu0 %v25
  %349 = vmatmul.mubr.f32.gmra.mxu0 %v24
  %v350 = vpop.f32.mrf.mxu0
  %v351 = vadd.f32 %v276, %v350
  %v352 = vpop.f32.mrf.mxu0
  %353 = vdwg.mxu0
  %vm354 = vcmask 523264
  %355 = vst.msk [vmem:[%s3] sm:$0xff] %vm354, %v346
  %356 = vst.msk [vmem:[%s3 + $0x8] sm:$0xff] %vm354, %v351
  // Predicated region
  $region14: #{lstm_net_forward.2} parent=0 // pred_check
    _
  $region15: #{lstm_net_forward.2} parent=0 // pred_check_branch
    %358 = sbr.rel (0) target = $region17
  $region16: #{lstm_net_forward.2} parent=0 // pred_region
    _
  $region17: #{lstm_net_forward.2} parent=0 // pred_fallthru
    _
  // Predicated region
  $region18: #{lstm_net_forward.2} parent=0 // pred_check
    _
  $region19: #{lstm_net_forward.2} parent=0 // pred_check_branch
    %360 = sbr.rel (0) target = $region21
  $region20: #{lstm_net_forward.2} parent=0 // pred_region
    _
  $region21: #{lstm_net_forward.2} parent=0 // pred_fallthru
    _

// kernel: lstm_net_forward.3
$region0: #{lstm_net_forward.3}
  #allocation0 [shape = 'u32[]', space=smem, size = 0x4, offset = 0x4, fixed_abs, tag = 'smem constant byte address 0x4 - core index']
  #allocation1 [shape = 'u32[144,128]{1,0:T(1,128)}', space=vmem, size = 0x12000, scoped, tag = 'internal scratch']
  #allocation2 [shape = 'f32[2,16]{1,0:T(2,128)}', space=vmem, size = 0x400, scoped, tag = 'scratch operand']
  #allocation3 [shape = 'f32[2,16]{1,0:T(2,128)}', space=vmem, size = 0x400, scoped, tag = 'scratch operand']
  %s0 = inlined_call_operand.vmem [shape: f32[2,8,64], index: 0, kind: input, shape index: {}]
  %s1 = inlined_call_operand.vmem [shape: f32[16,64], index: 1, kind: input, shape index: {}]
  %s2 = inlined_call_operand.vmem [shape: f32[16,6], index: 2, kind: input, shape index: {}]
  %s3 = inlined_call_operand.vmem [shape: f32[1,6], index: 3, kind: input, shape index: {}]
  %s4 = inlined_call_operand.hbm [shape: f32[2,6], index: 4, kind: output, shape index: {}]
  %s5 = sld [smem:[#allocation0]]
  $region34: #{lstm_net_forward.3} parent=0
    _
  %s7 = ssub.s32 1, %s5
  %s8 = scalar_select 0, %s7, %s5
  $region1: #{lstm_net_forward.3} parent=0
    #allocation4 [shape = 'u8[1024]{0}', space=vmem, size = 0x400, scoped, tag = 'output window, operand 0, single buffered']
    #allocation5 [shape = 's32[1]{0}', space=sflag, size = 0x4, scoped, tag = 'scoped memory for lstm_net_forward.3']
    %9 = vsyncpa [#allocation5], 0
    // Predicated region
    $region2: #{lstm_net_forward.3} parent=1 // pred_check
      _
    $region3: #{lstm_net_forward.3} parent=1 // pred_check_branch
      %11 = sbr.rel (0) target = $region5
    $region4: #{lstm_net_forward.3} parent=1 // pred_region
      %s12 = ssub.s32 0, 0
      %p13 = scmp.lt.s32.totalorder %s12, 0
      %s14 = scalar_select %p13, %s12, 0
      %s15 = smul.addr %s14, 8
      %s16 = scalar_lea.vmem %s0, %s15
      %s17 = ssub.s32 0, 0
    $region5: #{lstm_net_forward.3} parent=1 // pred_fallthru
      _
    // Predicated region
    $region6: #{lstm_net_forward.3} parent=1 // pred_check
      _
    $region7: #{lstm_net_forward.3} parent=1 // pred_check_branch
      %19 = sbr.rel (0) target = $region9
    $region8: #{lstm_net_forward.3} parent=1 // pred_region
      _
    $region9: #{lstm_net_forward.3} parent=1 // pred_fallthru
      _
    // Predicated region
    $region10: #{lstm_net_forward.3} parent=1 // pred_check
      _
    $region11: #{lstm_net_forward.3} parent=1 // pred_check_branch
      %21 = sbr.rel (0) target = $region13
    $region12: #{lstm_net_forward.3} parent=1 // pred_region
      _
    $region13: #{lstm_net_forward.3} parent=1 // pred_fallthru
      _
    // Predicated region
    $region14: #{lstm_net_forward.3} parent=1 // pred_check
      _
    $region15: #{lstm_net_forward.3} parent=1 // pred_check_branch
      %23 = sbr.rel (0) target = $region17
    $region16: #{lstm_net_forward.3} parent=1 // pred_region
      _
    $region17: #{lstm_net_forward.3} parent=1 // pred_fallthru
      _
    %s24 = ssub.s32 0, 0
    %p25 = scmp.lt.s32.totalorder %s24, 0
    %s26 = scalar_select %p25, %s24, 0
    %s27 = smul.addr %s26, 8
    %s28 = scalar_lea.vmem %s0, %s27
    %s29 = ssub.s32 0, 0
    %p30 = scmp.lt.s32.totalorder %s29, 0
    %s31 = scalar_select %p30, %s29, 0
    %s32 = smul.addr %s31, 8
    %s33 = scalar_lea.vmem %s0, %s32
    %s34 = ssub.s32 0, 0
    %p35 = scmp.eq.s32.totalorder 0, 0
    // Predicated region
    $region18: #{lstm_net_forward.3} parent=1 // pred_check
      %p36 = pneg %p35
    $region19: #{lstm_net_forward.3} parent=1 // pred_check_branch
      %38 = sbr.rel (%p36) target = $region21
    $region20: #{lstm_net_forward.3} parent=1 // pred_region
      %vm39 = vcmask 123904
      %40 = vst.msk [vmem:[#allocation2] sm:$0x3] %vm39, 0.0
      %41 = vst.msk [vmem:[#allocation3] sm:$0x3] %vm39, 0.0
    $region21: #{lstm_net_forward.3} parent=1 // pred_fallthru
      _
    %v42 = vld [vmem:[%s1] sm:$0xff]
    %v43 = vld [vmem:[%s1 + $0x8] sm:$0xff]
    %v44 = vld [vmem:[#allocation2] sm:$0x3]
    %v45 = vld [vmem:[#allocation3] sm:$0x3]
    %v46 = vld [vmem:[%s33 + $0x7] sm:$0x1]
    %v47 = vld [vmem:[%s33 + $0xf] sm:$0x1]
    %vm48 = vcmask 130048
    %v50 = vsel %vm48, %v44, 0
    %52 = vmatprep.subr.mxu0 0.0
    %53 = vmatpush1.msra.mxu0 0.0
    %54 = vmatprep.subr.mxu0 0.0
    %55 = vmatpush1.msra.mxu0 0.0
    %56 = vmatprep.subr.mxu0 0.0
    %57 = vmatpush1.msra.mxu0 0.0
    %58 = vmatprep.subr.mxu0 0.0
    %59 = vmatpush1.msra.mxu0 0.0
    %60 = vmatprep.subr.mxu0 0.0
    %61 = vmatpush1.msra.mxu0 0.0
    %62 = vmatprep.subr.mxu0 0.0
    %63 = vmatpush1.msra.mxu0 0.0
    %64 = vmatprep.subr.mxu0 0.0
    %65 = vmatpush1.msra.mxu0 0.0
    %66 = vmatprep.subr.mxu0 0.0
    %67 = vmatpush1.msra.mxu0 0.0
    %68 = vmatprep.subr.mxu0 0.0
    %69 = vmatpush1.msra.mxu0 0.0
    %70 = vmatprep.subr.mxu0 0.0
    %71 = vmatpush1.msra.mxu0 0.0
    %72 = vmatprep.subr.mxu0 0.0
    %73 = vmatpush1.msra.mxu0 0.0
    %74 = vmatprep.subr.mxu0 0.0
    %75 = vmatpush1.msra.mxu0 0.0
    %76 = vmatprep.subr.mxu0 0.0
    %77 = vmatpush1.msra.mxu0 0.0
    %78 = vmatprep.subr.mxu0 0.0
    %79 = vmatpush1.msra.mxu0 0.0
    %80 = vmatprep.subr.mxu0 0.0
    %81 = vmatpush1.msra.mxu0 %v43
    %82 = vmatprep.subr.mxu0 0.0
    %83 = vmatpush1.msra.mxu0 %v42
    %84 = vmatprep.subr.mxu0 0.0
    %85 = vmatpush2.msra.mxu0 0.0
    %86 = vmatprep.subr.mxu0 0.0
    %87 = vmatpush2.msra.mxu0 0.0
    %88 = vmatprep.subr.mxu0 0.0
    %89 = vmatpush2.msra.mxu0 0.0
    %90 = vmatprep.subr.mxu0 0.0
    %91 = vmatpush2.msra.mxu0 0.0
    %92 = vmatprep.subr.mxu0 0.0
    %93 = vmatpush2.msra.mxu0 0.0
    %94 = vmatprep.subr.mxu0 0.0
    %95 = vmatpush2.msra.mxu0 0.0
    %96 = vmatprep.subr.mxu0 0.0
    %97 = vmatpush2.msra.mxu0 0.0
    %98 = vmatprep.subr.mxu0 0.0
    %99 = vmatpush2.msra.mxu0 0.0
    %100 = vmatprep.subr.mxu0 0.0
    %101 = vmatpush2.msra.mxu0 0.0
    %102 = vmatprep.subr.mxu0 0.0
    %103 = vmatpush2.msra.mxu0 0.0
    %104 = vmatprep.subr.mxu0 0.0
    %105 = vmatpush2.msra.mxu0 0.0
    %106 = vmatprep.subr.mxu0 0.0
    %107 = vmatpush2.msra.mxu0 0.0
    %108 = vmatprep.subr.mxu0 0.0
    %109 = vmatpush2.msra.mxu0 0.0
    %110 = vmatprep.subr.mxu0 0.0
    %111 = vmatpush2.msra.mxu0 0.0
    %112 = vmatprep.subr.mxu0 0.0
    %113 = vmatpush2.msra.mxu0 0.0
    %114 = vmatprep.subr.mxu0 0.0
    %115 = vmatpush2.msra.mxu0 0.0
    %116 = vmatprep.mubr.f32.mxu0 0.0
    %117 = vmatmul.mubr.f32.gmra.mxu0 %v50
    %v118 = vpop.f32.mrf.mxu0
    %v119 = vadd.f32 0.0, %v118
    %v120 = vpop.f32.mrf.mxu0
    %121 = vdwg.mxu0
    %v123 = vrot.slane %v119, 1
    %v126 = vadd.f32 %v46, %v119
    %v127 = vadd.f32 %v47, %v123
    %v128 = vxor.u32 %v126, 2147483648
    %v129 = vxor.u32 %v127, 2147483648
    %v130 = vmul.f32 %v128, 1.442695
    %v131 = vpow.pop %v130
    %v132 = vmul.f32 %v129, 1.442695
    %v133 = vpow.pop %v132
    %v134 = vadd.f32 %v131, 1.0
    %v135 = vadd.f32 %v133, 1.0
    %v136 = vrcp.pop %v134
    %v137 = vmul.f32 1.0, %v136
    %v138 = vrcp.pop %v135
    %v139 = vmul.f32 1.0, %v138
    %v140 = vtanh.pop %v126
    %v141 = vtanh.pop %v127
    %v143 = vrot.slane %v45, 1
    %144 = vrot.lane.b32.xlu0 %v45, 16
    %v145 = vpop.permute.xlu0 %144
    %146 = vrot.lane.b32.xlu0 %v143, 16
    %v147 = vpop.permute.xlu0 %146
    %v150 = vmul.f32 %v137, %v145
    %v151 = vmul.f32 %v139, %v147
    %154 = vrot.lane.b32.xlu0 %v140, 96
    %v155 = vpop.permute.xlu0 %154
    %156 = vrot.lane.b32.xlu0 %v141, 96
    %v157 = vpop.permute.xlu0 %156
    %v160 = vmul.f32 %v137, %v155
    %v161 = vmul.f32 %v139, %v157
    %164 = vrot.lane.b32.xlu0 %v160, 16
    %v165 = vpop.permute.xlu0 %164
    %166 = vrot.lane.b32.xlu0 %v161, 16
    %v167 = vpop.permute.xlu0 %166
    %v170 = vadd.f32 %v150, %v165
    %v171 = vadd.f32 %v151, %v167
    %v172 = vtanh.pop %v170
    %v173 = vtanh.pop %v171
    %176 = vrot.lane.b32.xlu0 %v172, 32
    %v177 = vpop.permute.xlu0 %176
    %178 = vrot.lane.b32.xlu0 %v173, 32
    %v179 = vpop.permute.xlu0 %178
    %v182 = vmul.f32 %v137, %v177
    %v183 = vmul.f32 %v139, %v179
    %v184 = vld [vmem:[%s33 + $0x6] sm:$0x1]
    %v185 = vld [vmem:[%s33 + $0xe] sm:$0x1]
    %v188 = vrot.slane %v183, 7
    %vm189 = vcmask 1041409
    %v190 = vsel %vm189, %v188, %v182
    %191 = vrot.lane.b32.xlu0 %v190, 80
    %v192 = vpop.permute.xlu0 %191
    %v193 = vsel %vm48, %v192, 0
    %195 = vmatprep.subr.mxu0 0.0
    %196 = vmatpush1.msra.mxu0 0.0
    %197 = vmatprep.subr.mxu0 0.0
    %198 = vmatpush1.msra.mxu0 0.0
    %199 = vmatprep.subr.mxu0 0.0
    %200 = vmatpush1.msra.mxu0 0.0
    %201 = vmatprep.subr.mxu0 0.0
    %202 = vmatpush1.msra.mxu0 0.0
    %203 = vmatprep.subr.mxu0 0.0
    %204 = vmatpush1.msra.mxu0 0.0
    %205 = vmatprep.subr.mxu0 0.0
    %206 = vmatpush1.msra.mxu0 0.0
    %207 = vmatprep.subr.mxu0 0.0
    %208 = vmatpush1.msra.mxu0 0.0
    %209 = vmatprep.subr.mxu0 0.0
    %210 = vmatpush1.msra.mxu0 0.0
    %211 = vmatprep.subr.mxu0 0.0
    %212 = vmatpush1.msra.mxu0 0.0
    %213 = vmatprep.subr.mxu0 0.0
    %214 = vmatpush1.msra.mxu0 0.0
    %215 = vmatprep.subr.mxu0 0.0
    %216 = vmatpush1.msra.mxu0 0.0
    %217 = vmatprep.subr.mxu0 0.0
    %218 = vmatpush1.msra.mxu0 0.0
    %219 = vmatprep.subr.mxu0 0.0
    %220 = vmatpush1.msra.mxu0 0.0
    %221 = vmatprep.subr.mxu0 0.0
    %222 = vmatpush1.msra.mxu0 0.0
    %223 = vmatprep.subr.mxu0 0.0
    %224 = vmatpush1.msra.mxu0 %v43
    %225 = vmatprep.subr.mxu0 0.0
    %226 = vmatpush1.msra.mxu0 %v42
    %227 = vmatprep.subr.mxu0 0.0
    %228 = vmatpush2.msra.mxu0 0.0
    %229 = vmatprep.subr.mxu0 0.0
    %230 = vmatpush2.msra.mxu0 0.0
    %231 = vmatprep.subr.mxu0 0.0
    %232 = vmatpush2.msra.mxu0 0.0
    %233 = vmatprep.subr.mxu0 0.0
    %234 = vmatpush2.msra.mxu0 0.0
    %235 = vmatprep.subr.mxu0 0.0
    %236 = vmatpush2.msra.mxu0 0.0
    %237 = vmatprep.subr.mxu0 0.0
    %238 = vmatpush2.msra.mxu0 0.0
    %239 = vmatprep.subr.mxu0 0.0
    %240 = vmatpush2.msra.mxu0 0.0
    %241 = vmatprep.subr.mxu0 0.0
    %242 = vmatpush2.msra.mxu0 0.0
    %243 = vmatprep.subr.mxu0 0.0
    %244 = vmatpush2.msra.mxu0 0.0
    %245 = vmatprep.subr.mxu0 0.0
    %246 = vmatpush2.msra.mxu0 0.0
    %247 = vmatprep.subr.mxu0 0.0
    %248 = vmatpush2.msra.mxu0 0.0
    %249 = vmatprep.subr.mxu0 0.0
    %250 = vmatpush2.msra.mxu0 0.0
    %251 = vmatprep.subr.mxu0 0.0
    %252 = vmatpush2.msra.mxu0 0.0
    %253 = vmatprep.subr.mxu0 0.0
    %254 = vmatpush2.msra.mxu0 0.0
    %255 = vmatprep.subr.mxu0 0.0
    %256 = vmatpush2.msra.mxu0 0.0
    %257 = vmatprep.subr.mxu0 0.0
    %258 = vmatpush2.msra.mxu0 0.0
    %259 = vmatprep.mubr.f32.mxu0 0.0
    %260 = vmatmul.mubr.f32.gmra.mxu0 %v193
    %v261 = vpop.f32.mrf.mxu0
    %v262 = vadd.f32 0.0, %v261
    %v263 = vpop.f32.mrf.mxu0
    %264 = vdwg.mxu0
    %v266 = vrot.slane %v262, 1
    %v269 = vadd.f32 %v184, %v262
    %v270 = vadd.f32 %v185, %v266
    %v271 = vxor.u32 %v269, 2147483648
    %v272 = vxor.u32 %v270, 2147483648
    %v273 = vmul.f32 %v271, 1.442695
    %v274 = vpow.pop %v273
    %v275 = vmul.f32 %v272, 1.442695
    %v276 = vpow.pop %v275
    %v277 = vadd.f32 %v274, 1.0
    %v278 = vadd.f32 %v276, 1.0
    %v279 = vrcp.pop %v277
    %v280 = vmul.f32 1.0, %v279
    %v281 = vrcp.pop %v278
    %v282 = vmul.f32 1.0, %v281
    %v283 = vtanh.pop %v269
    %v284 = vtanh.pop %v270
    %v285 = vmul.f32 %v280, %v170
    %v286 = vmul.f32 %v282, %v171
    %289 = vrot.lane.b32.xlu0 %v283, 96
    %v290 = vpop.permute.xlu0 %289
    %291 = vrot.lane.b32.xlu0 %v284, 96
    %v292 = vpop.permute.xlu0 %291
    %v295 = vmul.f32 %v280, %v290
    %v296 = vmul.f32 %v282, %v292
    %299 = vrot.lane.b32.xlu0 %v295, 16
    %v300 = vpop.permute.xlu0 %299
    %301 = vrot.lane.b32.xlu0 %v296, 16
    %v302 = vpop.permute.xlu0 %301
    %v305 = vadd.f32 %v285, %v300
    %v306 = vadd.f32 %v286, %v302
    %v307 = vtanh.pop %v305
    %v308 = vtanh.pop %v306
    %311 = vrot.lane.b32.xlu0 %v307, 32
    %v312 = vpop.permute.xlu0 %311
    %313 = vrot.lane.b32.xlu0 %v308, 32
    %v314 = vpop.permute.xlu0 %313
    %v317 = vmul.f32 %v280, %v312
    %v318 = vmul.f32 %v282, %v314
    %v319 = vld [vmem:[%s33 + $0x5] sm:$0x1]
    %v320 = vld [vmem:[%s33 + $0xd] sm:$0x1]
    %v323 = vrot.slane %v318, 7
    %v324 = vsel %vm189, %v323, %v317
    %325 = vrot.lane.b32.xlu0 %v324, 80
    %v326 = vpop.permute.xlu0 %325
    %v327 = vsel %vm48, %v326, 0
    %329 = vmatprep.subr.mxu0 0.0
    %330 = vmatpush1.msra.mxu0 0.0
    %331 = vmatprep.subr.mxu0 0.0
    %332 = vmatpush1.msra.mxu0 0.0
    %333 = vmatprep.subr.mxu0 0.0
    %334 = vmatpush1.msra.mxu0 0.0
    %335 = vmatprep.subr.mxu0 0.0
    %336 = vmatpush1.msra.mxu0 0.0
    %337 = vmatprep.subr.mxu0 0.0
    %338 = vmatpush1.msra.mxu0 0.0
    %339 = vmatprep.subr.mxu0 0.0
    %340 = vmatpush1.msra.mxu0 0.0
    %341 = vmatprep.subr.mxu0 0.0
    %342 = vmatpush1.msra.mxu0 0.0
    %343 = vmatprep.subr.mxu0 0.0
    %344 = vmatpush1.msra.mxu0 0.0
    %345 = vmatprep.subr.mxu0 0.0
    %346 = vmatpush1.msra.mxu0 0.0
    %347 = vmatprep.subr.mxu0 0.0
    %348 = vmatpush1.msra.mxu0 0.0
    %349 = vmatprep.subr.mxu0 0.0
    %350 = vmatpush1.msra.mxu0 0.0
    %351 = vmatprep.subr.mxu0 0.0
    %352 = vmatpush1.msra.mxu0 0.0
    %353 = vmatprep.subr.mxu0 0.0
    %354 = vmatpush1.msra.mxu0 0.0
    %355 = vmatprep.subr.mxu0 0.0
    %356 = vmatpush1.msra.mxu0 0.0
    %357 = vmatprep.subr.mxu0 0.0
    %358 = vmatpush1.msra.mxu0 %v43
    %359 = vmatprep.subr.mxu0 0.0
    %360 = vmatpush1.msra.mxu0 %v42
    %361 = vmatprep.subr.mxu0 0.0
    %362 = vmatpush2.msra.mxu0 0.0
    %363 = vmatprep.subr.mxu0 0.0
    %364 = vmatpush2.msra.mxu0 0.0
    %365 = vmatprep.subr.mxu0 0.0
    %366 = vmatpush2.msra.mxu0 0.0
    %367 = vmatprep.subr.mxu0 0.0
    %368 = vmatpush2.msra.mxu0 0.0
    %369 = vmatprep.subr.mxu0 0.0
    %370 = vmatpush2.msra.mxu0 0.0
    %371 = vmatprep.subr.mxu0 0.0
    %372 = vmatpush2.msra.mxu0 0.0
    %373 = vmatprep.subr.mxu0 0.0
    %374 = vmatpush2.msra.mxu0 0.0
    %375 = vmatprep.subr.mxu0 0.0
    %376 = vmatpush2.msra.mxu0 0.0
    %377 = vmatprep.subr.mxu0 0.0
    %378 = vmatpush2.msra.mxu0 0.0
    %379 = vmatprep.subr.mxu0 0.0
    %380 = vmatpush2.msra.mxu0 0.0
    %381 = vmatprep.subr.mxu0 0.0
    %382 = vmatpush2.msra.mxu0 0.0
    %383 = vmatprep.subr.mxu0 0.0
    %384 = vmatpush2.msra.mxu0 0.0
    %385 = vmatprep.subr.mxu0 0.0
    %386 = vmatpush2.msra.mxu0 0.0
    %387 = vmatprep.subr.mxu0 0.0
    %388 = vmatpush2.msra.mxu0 0.0
    %389 = vmatprep.subr.mxu0 0.0
    %390 = vmatpush2.msra.mxu0 0.0
    %391 = vmatprep.subr.mxu0 0.0
    %392 = vmatpush2.msra.mxu0 0.0
    %393 = vmatprep.mubr.f32.mxu0 0.0
    %394 = vmatmul.mubr.f32.gmra.mxu0 %v327
    %v395 = vpop.f32.mrf.mxu0
    %v396 = vadd.f32 0.0, %v395
    %v397 = vpop.f32.mrf.mxu0
    %398 = vdwg.mxu0
    %v400 = vrot.slane %v396, 1
    %v403 = vadd.f32 %v319, %v396
    %v404 = vadd.f32 %v320, %v400
    %v405 = vxor.u32 %v403, 2147483648
    %v406 = vxor.u32 %v404, 2147483648
    %v407 = vmul.f32 %v405, 1.442695
    %v408 = vpow.pop %v407
    %v409 = vmul.f32 %v406, 1.442695
    %v410 = vpow.pop %v409
    %v411 = vadd.f32 %v408, 1.0
    %v412 = vadd.f32 %v410, 1.0
    %v413 = vrcp.pop %v411
    %v414 = vmul.f32 1.0, %v413
    %v415 = vrcp.pop %v412
    %v416 = vmul.f32 1.0, %v415
    %v417 = vtanh.pop %v403
    %v418 = vtanh.pop %v404
    %v419 = vmul.f32 %v414, %v305
    %v420 = vmul.f32 %v416, %v306
    %423 = vrot.lane.b32.xlu0 %v417, 96
    %v424 = vpop.permute.xlu0 %423
    %425 = vrot.lane.b32.xlu0 %v418, 96
    %v426 = vpop.permute.xlu0 %425
    %v429 = vmul.f32 %v414, %v424
    %v430 = vmul.f32 %v416, %v426
    %433 = vrot.lane.b32.xlu0 %v429, 16
    %v434 = vpop.permute.xlu0 %433
    %435 = vrot.lane.b32.xlu0 %v430, 16
    %v436 = vpop.permute.xlu0 %435
    %v439 = vadd.f32 %v419, %v434
    %v440 = vadd.f32 %v420, %v436
    %v441 = vtanh.pop %v439
    %v442 = vtanh.pop %v440
    %445 = vrot.lane.b32.xlu0 %v441, 32
    %v446 = vpop.permute.xlu0 %445
    %447 = vrot.lane.b32.xlu0 %v442, 32
    %v448 = vpop.permute.xlu0 %447
    %v451 = vmul.f32 %v414, %v446
    %v452 = vmul.f32 %v416, %v448
    %v453 = vld [vmem:[%s33 + $0x4] sm:$0x1]
    %v454 = vld [vmem:[%s33 + $0xc] sm:$0x1]
    %v457 = vrot.slane %v452, 7
    %v458 = vsel %vm189, %v457, %v451
    %459 = vrot.lane.b32.xlu0 %v458, 80
    %v460 = vpop.permute.xlu0 %459
    %v461 = vsel %vm48, %v460, 0
    %463 = vmatprep.subr.mxu0 0.0
    %464 = vmatpush1.msra.mxu0 0.0
    %465 = vmatprep.subr.mxu0 0.0
    %466 = vmatpush1.msra.mxu0 0.0
    %467 = vmatprep.subr.mxu0 0.0
    %468 = vmatpush1.msra.mxu0 0.0
    %469 = vmatprep.subr.mxu0 0.0
    %470 = vmatpush1.msra.mxu0 0.0
    %471 = vmatprep.subr.mxu0 0.0
    %472 = vmatpush1.msra.mxu0 0.0
    %473 = vmatprep.subr.mxu0 0.0
    %474 = vmatpush1.msra.mxu0 0.0
    %475 = vmatprep.subr.mxu0 0.0
    %476 = vmatpush1.msra.mxu0 0.0
    %477 = vmatprep.subr.mxu0 0.0
    %478 = vmatpush1.msra.mxu0 0.0
    %479 = vmatprep.subr.mxu0 0.0
    %480 = vmatpush1.msra.mxu0 0.0
    %481 = vmatprep.subr.mxu0 0.0
    %482 = vmatpush1.msra.mxu0 0.0
    %483 = vmatprep.subr.mxu0 0.0
    %484 = vmatpush1.msra.mxu0 0.0
    %485 = vmatprep.subr.mxu0 0.0
    %486 = vmatpush1.msra.mxu0 0.0
    %487 = vmatprep.subr.mxu0 0.0
    %488 = vmatpush1.msra.mxu0 0.0
    %489 = vmatprep.subr.mxu0 0.0
    %490 = vmatpush1.msra.mxu0 0.0
    %491 = vmatprep.subr.mxu0 0.0
    %492 = vmatpush1.msra.mxu0 %v43
    %493 = vmatprep.subr.mxu0 0.0
    %494 = vmatpush1.msra.mxu0 %v42
    %495 = vmatprep.subr.mxu0 0.0
    %496 = vmatpush2.msra.mxu0 0.0
    %497 = vmatprep.subr.mxu0 0.0
    %498 = vmatpush2.msra.mxu0 0.0
    %499 = vmatprep.subr.mxu0 0.0
    %500 = vmatpush2.msra.mxu0 0.0
    %501 = vmatprep.subr.mxu0 0.0
    %502 = vmatpush2.msra.mxu0 0.0
    %503 = vmatprep.subr.mxu0 0.0
    %504 = vmatpush2.msra.mxu0 0.0
    %505 = vmatprep.subr.mxu0 0.0
    %506 = vmatpush2.msra.mxu0 0.0
    %507 = vmatprep.subr.mxu0 0.0
    %508 = vmatpush2.msra.mxu0 0.0
    %509 = vmatprep.subr.mxu0 0.0
    %510 = vmatpush2.msra.mxu0 0.0
    %511 = vmatprep.subr.mxu0 0.0
    %512 = vmatpush2.msra.mxu0 0.0
    %513 = vmatprep.subr.mxu0 0.0
    %514 = vmatpush2.msra.mxu0 0.0
    %515 = vmatprep.subr.mxu0 0.0
    %516 = vmatpush2.msra.mxu0 0.0
    %517 = vmatprep.subr.mxu0 0.0
    %518 = vmatpush2.msra.mxu0 0.0
    %519 = vmatprep.subr.mxu0 0.0
    %520 = vmatpush2.msra.mxu0 0.0
    %521 = vmatprep.subr.mxu0 0.0
    %522 = vmatpush2.msra.mxu0 0.0
    %523 = vmatprep.subr.mxu0 0.0
    %524 = vmatpush2.msra.mxu0 0.0
    %525 = vmatprep.subr.mxu0 0.0
    %526 = vmatpush2.msra.mxu0 0.0
    %527 = vmatprep.mubr.f32.mxu0 0.0
    %528 = vmatmul.mubr.f32.gmra.mxu0 %v461
    %v529 = vpop.f32.mrf.mxu0
    %v530 = vadd.f32 0.0, %v529
    %v531 = vpop.f32.mrf.mxu0
    %532 = vdwg.mxu0
    %v534 = vrot.slane %v530, 1
    %v537 = vadd.f32 %v453, %v530
    %v538 = vadd.f32 %v454, %v534
    %v539 = vxor.u32 %v537, 2147483648
    %v540 = vxor.u32 %v538, 2147483648
    %v541 = vmul.f32 %v539, 1.442695
    %v542 = vpow.pop %v541
    %v543 = vmul.f32 %v540, 1.442695
    %v544 = vpow.pop %v543
    %v545 = vadd.f32 %v542, 1.0
    %v546 = vadd.f32 %v544, 1.0
    %v547 = vrcp.pop %v545
    %v548 = vmul.f32 1.0, %v547
    %v549 = vrcp.pop %v546
    %v550 = vmul.f32 1.0, %v549
    %v551 = vtanh.pop %v537
    %v552 = vtanh.pop %v538
    %v553 = vmul.f32 %v548, %v439
    %v554 = vmul.f32 %v550, %v440
    %557 = vrot.lane.b32.xlu0 %v551, 96
    %v558 = vpop.permute.xlu0 %557
    %559 = vrot.lane.b32.xlu0 %v552, 96
    %v560 = vpop.permute.xlu0 %559
    %v563 = vmul.f32 %v548, %v558
    %v564 = vmul.f32 %v550, %v560
    %567 = vrot.lane.b32.xlu0 %v563, 16
    %v568 = vpop.permute.xlu0 %567
    %569 = vrot.lane.b32.xlu0 %v564, 16
    %v570 = vpop.permute.xlu0 %569
    %v573 = vadd.f32 %v553, %v568
    %v574 = vadd.f32 %v554, %v570
    %v575 = vtanh.pop %v573
    %v576 = vtanh.pop %v574
    %579 = vrot.lane.b32.xlu0 %v575, 32
    %v580 = vpop.permute.xlu0 %579
    %581 = vrot.lane.b32.xlu0 %v576, 32
    %v582 = vpop.permute.xlu0 %581
    %v585 = vmul.f32 %v548, %v580
    %v586 = vmul.f32 %v550, %v582
    %v587 = vld [vmem:[%s33 + $0x3] sm:$0x1]
    %v588 = vld [vmem:[%s33 + $0xb] sm:$0x1]
    %v591 = vrot.slane %v586, 7
    %v592 = vsel %vm189, %v591, %v585
    %593 = vrot.lane.b32.xlu0 %v592, 80
    %v594 = vpop.permute.xlu0 %593
    %v595 = vsel %vm48, %v594, 0
    %597 = vmatprep.subr.mxu0 0.0
    %598 = vmatpush1.msra.mxu0 0.0
    %599 = vmatprep.subr.mxu0 0.0
    %600 = vmatpush1.msra.mxu0 0.0
    %601 = vmatprep.subr.mxu0 0.0
    %602 = vmatpush1.msra.mxu0 0.0
    %603 = vmatprep.subr.mxu0 0.0
    %604 = vmatpush1.msra.mxu0 0.0
    %605 = vmatprep.subr.mxu0 0.0
    %606 = vmatpush1.msra.mxu0 0.0
    %607 = vmatprep.subr.mxu0 0.0
    %608 = vmatpush1.msra.mxu0 0.0
    %609 = vmatprep.subr.mxu0 0.0
    %610 = vmatpush1.msra.mxu0 0.0
    %611 = vmatprep.subr.mxu0 0.0
    %612 = vmatpush1.msra.mxu0 0.0
    %613 = vmatprep.subr.mxu0 0.0
    %614 = vmatpush1.msra.mxu0 0.0
    %615 = vmatprep.subr.mxu0 0.0
    %616 = vmatpush1.msra.mxu0 0.0
    %617 = vmatprep.subr.mxu0 0.0
    %618 = vmatpush1.msra.mxu0 0.0
    %619 = vmatprep.subr.mxu0 0.0
    %620 = vmatpush1.msra.mxu0 0.0
    %621 = vmatprep.subr.mxu0 0.0
    %622 = vmatpush1.msra.mxu0 0.0
    %623 = vmatprep.subr.mxu0 0.0
    %624 = vmatpush1.msra.mxu0 0.0
    %625 = vmatprep.subr.mxu0 0.0
    %626 = vmatpush1.msra.mxu0 %v43
    %627 = vmatprep.subr.mxu0 0.0
    %628 = vmatpush1.msra.mxu0 %v42
    %629 = vmatprep.subr.mxu0 0.0
    %630 = vmatpush2.msra.mxu0 0.0
    %631 = vmatprep.subr.mxu0 0.0
    %632 = vmatpush2.msra.mxu0 0.0
    %633 = vmatprep.subr.mxu0 0.0
    %634 = vmatpush2.msra.mxu0 0.0
    %635 = vmatprep.subr.mxu0 0.0
    %636 = vmatpush2.msra.mxu0 0.0
    %637 = vmatprep.subr.mxu0 0.0
    %638 = vmatpush2.msra.mxu0 0.0
    %639 = vmatprep.subr.mxu0 0.0
    %640 = vmatpush2.msra.mxu0 0.0
    %641 = vmatprep.subr.mxu0 0.0
    %642 = vmatpush2.msra.mxu0 0.0
    %643 = vmatprep.subr.mxu0 0.0
    %644 = vmatpush2.msra.mxu0 0.0
    %645 = vmatprep.subr.mxu0 0.0
    %646 = vmatpush2.msra.mxu0 0.0
    %647 = vmatprep.subr.mxu0 0.0
    %648 = vmatpush2.msra.mxu0 0.0
    %649 = vmatprep.subr.mxu0 0.0
    %650 = vmatpush2.msra.mxu0 0.0
    %651 = vmatprep.subr.mxu0 0.0
    %652 = vmatpush2.msra.mxu0 0.0
    %653 = vmatprep.subr.mxu0 0.0
    %654 = vmatpush2.msra.mxu0 0.0
    %655 = vmatprep.subr.mxu0 0.0
    %656 = vmatpush2.msra.mxu0 0.0
    %657 = vmatprep.subr.mxu0 0.0
    %658 = vmatpush2.msra.mxu0 0.0
    %659 = vmatprep.subr.mxu0 0.0
    %660 = vmatpush2.msra.mxu0 0.0
    %661 = vmatprep.mubr.f32.mxu0 0.0
    %662 = vmatmul.mubr.f32.gmra.mxu0 %v595
    %v663 = vpop.f32.mrf.mxu0
    %v664 = vadd.f32 0.0, %v663
    %v665 = vpop.f32.mrf.mxu0
    %666 = vdwg.mxu0
    %v668 = vrot.slane %v664, 1
    %v671 = vadd.f32 %v587, %v664
    %v672 = vadd.f32 %v588, %v668
    %v673 = vxor.u32 %v671, 2147483648
    %v674 = vxor.u32 %v672, 2147483648
    %v675 = vmul.f32 %v673, 1.442695
    %v676 = vpow.pop %v675
    %v677 = vmul.f32 %v674, 1.442695
    %v678 = vpow.pop %v677
    %v679 = vadd.f32 %v676, 1.0
    %v680 = vadd.f32 %v678, 1.0
    %v681 = vrcp.pop %v679
    %v682 = vmul.f32 1.0, %v681
    %v683 = vrcp.pop %v680
    %v684 = vmul.f32 1.0, %v683
    %v685 = vtanh.pop %v671
    %v686 = vtanh.pop %v672
    %v687 = vmul.f32 %v682, %v573
    %v688 = vmul.f32 %v684, %v574
    %691 = vrot.lane.b32.xlu0 %v685, 96
    %v692 = vpop.permute.xlu0 %691
    %693 = vrot.lane.b32.xlu0 %v686, 96
    %v694 = vpop.permute.xlu0 %693
    %v697 = vmul.f32 %v682, %v692
    %v698 = vmul.f32 %v684, %v694
    %701 = vrot.lane.b32.xlu0 %v697, 16
    %v702 = vpop.permute.xlu0 %701
    %703 = vrot.lane.b32.xlu0 %v698, 16
    %v704 = vpop.permute.xlu0 %703
    %v707 = vadd.f32 %v687, %v702
    %v708 = vadd.f32 %v688, %v704
    %v709 = vtanh.pop %v707
    %v710 = vtanh.pop %v708
    %713 = vrot.lane.b32.xlu0 %v709, 32
    %v714 = vpop.permute.xlu0 %713
    %715 = vrot.lane.b32.xlu0 %v710, 32
    %v716 = vpop.permute.xlu0 %715
    %v719 = vmul.f32 %v682, %v714
    %v720 = vmul.f32 %v684, %v716
    %v721 = vld [vmem:[%s33 + $0x2] sm:$0x1]
    %v722 = vld [vmem:[%s33 + $0xa] sm:$0x1]
    %v725 = vrot.slane %v720, 7
    %v726 = vsel %vm189, %v725, %v719
    %727 = vrot.lane.b32.xlu0 %v726, 80
    %v728 = vpop.permute.xlu0 %727
    %v729 = vsel %vm48, %v728, 0
    %731 = vmatprep.subr.mxu0 0.0
    %732 = vmatpush1.msra.mxu0 0.0
    %733 = vmatprep.subr.mxu0 0.0
    %734 = vmatpush1.msra.mxu0 0.0
    %735 = vmatprep.subr.mxu0 0.0
    %736 = vmatpush1.msra.mxu0 0.0
    %737 = vmatprep.subr.mxu0 0.0
    %738 = vmatpush1.msra.mxu0 0.0
    %739 = vmatprep.subr.mxu0 0.0
    %740 = vmatpush1.msra.mxu0 0.0
    %741 = vmatprep.subr.mxu0 0.0
    %742 = vmatpush1.msra.mxu0 0.0
    %743 = vmatprep.subr.mxu0 0.0
    %744 = vmatpush1.msra.mxu0 0.0
    %745 = vmatprep.subr.mxu0 0.0
    %746 = vmatpush1.msra.mxu0 0.0
    %747 = vmatprep.subr.mxu0 0.0
    %748 = vmatpush1.msra.mxu0 0.0
    %749 = vmatprep.subr.mxu0 0.0
    %750 = vmatpush1.msra.mxu0 0.0
    %751 = vmatprep.subr.mxu0 0.0
    %752 = vmatpush1.msra.mxu0 0.0
    %753 = vmatprep.subr.mxu0 0.0
    %754 = vmatpush1.msra.mxu0 0.0
    %755 = vmatprep.subr.mxu0 0.0
    %756 = vmatpush1.msra.mxu0 0.0
    %757 = vmatprep.subr.mxu0 0.0
    %758 = vmatpush1.msra.mxu0 0.0
    %759 = vmatprep.subr.mxu0 0.0
    %760 = vmatpush1.msra.mxu0 %v43
    %761 = vmatprep.subr.mxu0 0.0
    %762 = vmatpush1.msra.mxu0 %v42
    %763 = vmatprep.subr.mxu0 0.0
    %764 = vmatpush2.msra.mxu0 0.0
    %765 = vmatprep.subr.mxu0 0.0
    %766 = vmatpush2.msra.mxu0 0.0
    %767 = vmatprep.subr.mxu0 0.0
    %768 = vmatpush2.msra.mxu0 0.0
    %769 = vmatprep.subr.mxu0 0.0
    %770 = vmatpush2.msra.mxu0 0.0
    %771 = vmatprep.subr.mxu0 0.0
    %772 = vmatpush2.msra.mxu0 0.0
    %773 = vmatprep.subr.mxu0 0.0
    %774 = vmatpush2.msra.mxu0 0.0
    %775 = vmatprep.subr.mxu0 0.0
    %776 = vmatpush2.msra.mxu0 0.0
    %777 = vmatprep.subr.mxu0 0.0
    %778 = vmatpush2.msra.mxu0 0.0
    %779 = vmatprep.subr.mxu0 0.0
    %780 = vmatpush2.msra.mxu0 0.0
    %781 = vmatprep.subr.mxu0 0.0
    %782 = vmatpush2.msra.mxu0 0.0
    %783 = vmatprep.subr.mxu0 0.0
    %784 = vmatpush2.msra.mxu0 0.0
    %785 = vmatprep.subr.mxu0 0.0
    %786 = vmatpush2.msra.mxu0 0.0
    %787 = vmatprep.subr.mxu0 0.0
    %788 = vmatpush2.msra.mxu0 0.0
    %789 = vmatprep.subr.mxu0 0.0
    %790 = vmatpush2.msra.mxu0 0.0
    %791 = vmatprep.subr.mxu0 0.0
    %792 = vmatpush2.msra.mxu0 0.0
    %793 = vmatprep.subr.mxu0 0.0
    %794 = vmatpush2.msra.mxu0 0.0
    %795 = vmatprep.mubr.f32.mxu0 0.0
    %796 = vmatmul.mubr.f32.gmra.mxu0 %v729
    %v797 = vpop.f32.mrf.mxu0
    %v798 = vadd.f32 0.0, %v797
    %v799 = vpop.f32.mrf.mxu0
    %800 = vdwg.mxu0
    %v802 = vrot.slane %v798, 1
    %v805 = vadd.f32 %v721, %v798
    %v806 = vadd.f32 %v722, %v802
    %v807 = vxor.u32 %v805, 2147483648
    %v808 = vxor.u32 %v806, 2147483648
    %v809 = vmul.f32 %v807, 1.442695
    %v810 = vpow.pop %v809
    %v811 = vmul.f32 %v808, 1.442695
    %v812 = vpow.pop %v811
    %v813 = vadd.f32 %v810, 1.0
    %v814 = vadd.f32 %v812, 1.0
    %v815 = vrcp.pop %v813
    %v816 = vmul.f32 1.0, %v815
    %v817 = vrcp.pop %v814
    %v818 = vmul.f32 1.0, %v817
    %v819 = vtanh.pop %v805
    %v820 = vtanh.pop %v806
    %v821 = vmul.f32 %v816, %v707
    %v822 = vmul.f32 %v818, %v708
    %825 = vrot.lane.b32.xlu0 %v819, 96
    %v826 = vpop.permute.xlu0 %825
    %827 = vrot.lane.b32.xlu0 %v820, 96
    %v828 = vpop.permute.xlu0 %827
    %v831 = vmul.f32 %v816, %v826
    %v832 = vmul.f32 %v818, %v828
    %835 = vrot.lane.b32.xlu0 %v831, 16
    %v836 = vpop.permute.xlu0 %835
    %837 = vrot.lane.b32.xlu0 %v832, 16
    %v838 = vpop.permute.xlu0 %837
    %v841 = vadd.f32 %v821, %v836
    %v842 = vadd.f32 %v822, %v838
    %v843 = vtanh.pop %v841
    %v844 = vtanh.pop %v842
    %847 = vrot.lane.b32.xlu0 %v843, 32
    %v848 = vpop.permute.xlu0 %847
    %849 = vrot.lane.b32.xlu0 %v844, 32
    %v850 = vpop.permute.xlu0 %849
    %v853 = vmul.f32 %v816, %v848
    %v854 = vmul.f32 %v818, %v850
    %v855 = vld [vmem:[%s33 + $0x1] sm:$0x1]
    %v856 = vld [vmem:[%s33 + $0x9] sm:$0x1]
    %v859 = vrot.slane %v854, 7
    %v860 = vsel %vm189, %v859, %v853
    %861 = vrot.lane.b32.xlu0 %v860, 80
    %v862 = vpop.permute.xlu0 %861
    %v863 = vsel %vm48, %v862, 0
    %865 = vmatprep.subr.mxu0 0.0
    %866 = vmatpush1.msra.mxu0 0.0
    %867 = vmatprep.subr.mxu0 0.0
    %868 = vmatpush1.msra.mxu0 0.0
    %869 = vmatprep.subr.mxu0 0.0
    %870 = vmatpush1.msra.mxu0 0.0
    %871 = vmatprep.subr.mxu0 0.0
    %872 = vmatpush1.msra.mxu0 0.0
    %873 = vmatprep.subr.mxu0 0.0
    %874 = vmatpush1.msra.mxu0 0.0
    %875 = vmatprep.subr.mxu0 0.0
    %876 = vmatpush1.msra.mxu0 0.0
    %877 = vmatprep.subr.mxu0 0.0
    %878 = vmatpush1.msra.mxu0 0.0
    %879 = vmatprep.subr.mxu0 0.0
    %880 = vmatpush1.msra.mxu0 0.0
    %881 = vmatprep.subr.mxu0 0.0
    %882 = vmatpush1.msra.mxu0 0.0
    %883 = vmatprep.subr.mxu0 0.0
    %884 = vmatpush1.msra.mxu0 0.0
    %885 = vmatprep.subr.mxu0 0.0
    %886 = vmatpush1.msra.mxu0 0.0
    %887 = vmatprep.subr.mxu0 0.0
    %888 = vmatpush1.msra.mxu0 0.0
    %889 = vmatprep.subr.mxu0 0.0
    %890 = vmatpush1.msra.mxu0 0.0
    %891 = vmatprep.subr.mxu0 0.0
    %892 = vmatpush1.msra.mxu0 0.0
    %893 = vmatprep.subr.mxu0 0.0
    %894 = vmatpush1.msra.mxu0 %v43
    %895 = vmatprep.subr.mxu0 0.0
    %896 = vmatpush1.msra.mxu0 %v42
    %897 = vmatprep.subr.mxu0 0.0
    %898 = vmatpush2.msra.mxu0 0.0
    %899 = vmatprep.subr.mxu0 0.0
    %900 = vmatpush2.msra.mxu0 0.0
    %901 = vmatprep.subr.mxu0 0.0
    %902 = vmatpush2.msra.mxu0 0.0
    %903 = vmatprep.subr.mxu0 0.0
    %904 = vmatpush2.msra.mxu0 0.0
    %905 = vmatprep.subr.mxu0 0.0
    %906 = vmatpush2.msra.mxu0 0.0
    %907 = vmatprep.subr.mxu0 0.0
    %908 = vmatpush2.msra.mxu0 0.0
    %909 = vmatprep.subr.mxu0 0.0
    %910 = vmatpush2.msra.mxu0 0.0
    %911 = vmatprep.subr.mxu0 0.0
    %912 = vmatpush2.msra.mxu0 0.0
    %913 = vmatprep.subr.mxu0 0.0
    %914 = vmatpush2.msra.mxu0 0.0
    %915 = vmatprep.subr.mxu0 0.0
    %916 = vmatpush2.msra.mxu0 0.0
    %917 = vmatprep.subr.mxu0 0.0
    %918 = vmatpush2.msra.mxu0 0.0
    %919 = vmatprep.subr.mxu0 0.0
    %920 = vmatpush2.msra.mxu0 0.0
    %921 = vmatprep.subr.mxu0 0.0
    %922 = vmatpush2.msra.mxu0 0.0
    %923 = vmatprep.subr.mxu0 0.0
    %924 = vmatpush2.msra.mxu0 0.0
    %925 = vmatprep.subr.mxu0 0.0
    %926 = vmatpush2.msra.mxu0 0.0
    %927 = vmatprep.subr.mxu0 0.0
    %928 = vmatpush2.msra.mxu0 0.0
    %929 = vmatprep.mubr.f32.mxu0 0.0
    %930 = vmatmul.mubr.f32.gmra.mxu0 %v863
    %v931 = vpop.f32.mrf.mxu0
    %v932 = vadd.f32 0.0, %v931
    %v933 = vpop.f32.mrf.mxu0
    %934 = vdwg.mxu0
    %v936 = vrot.slane %v932, 1
    %v939 = vadd.f32 %v855, %v932
    %v940 = vadd.f32 %v856, %v936
    %v941 = vxor.u32 %v939, 2147483648
    %v942 = vxor.u32 %v940, 2147483648
    %v943 = vmul.f32 %v941, 1.442695
    %v944 = vpow.pop %v943
    %v945 = vmul.f32 %v942, 1.442695
    %v946 = vpow.pop %v945
    %v947 = vadd.f32 %v944, 1.0
    %v948 = vadd.f32 %v946, 1.0
    %v949 = vrcp.pop %v947
    %v950 = vmul.f32 1.0, %v949
    %v951 = vrcp.pop %v948
    %v952 = vmul.f32 1.0, %v951
    %v953 = vtanh.pop %v939
    %v954 = vtanh.pop %v940
    %v955 = vmul.f32 %v950, %v841
    %v956 = vmul.f32 %v952, %v842
    %959 = vrot.lane.b32.xlu0 %v953, 96
    %v960 = vpop.permute.xlu0 %959
    %961 = vrot.lane.b32.xlu0 %v954, 96
    %v962 = vpop.permute.xlu0 %961
    %v965 = vmul.f32 %v950, %v960
    %v966 = vmul.f32 %v952, %v962
    %969 = vrot.lane.b32.xlu0 %v965, 16
    %v970 = vpop.permute.xlu0 %969
    %971 = vrot.lane.b32.xlu0 %v966, 16
    %v972 = vpop.permute.xlu0 %971
    %v975 = vadd.f32 %v955, %v970
    %v976 = vadd.f32 %v956, %v972
    %v977 = vtanh.pop %v975
    %v978 = vtanh.pop %v976
    %981 = vrot.lane.b32.xlu0 %v977, 32
    %v982 = vpop.permute.xlu0 %981
    %983 = vrot.lane.b32.xlu0 %v978, 32
    %v984 = vpop.permute.xlu0 %983
    %v987 = vmul.f32 %v950, %v982
    %v988 = vmul.f32 %v952, %v984
    %v989 = vld [vmem:[%s33] sm:$0x1]
    %v990 = vld [vmem:[%s33 + $0x8] sm:$0x1]
    %v993 = vrot.slane %v988, 7
    %v994 = vsel %vm189, %v993, %v987
    %995 = vrot.lane.b32.xlu0 %v994, 80
    %v996 = vpop.permute.xlu0 %995
    %v997 = vsel %vm48, %v996, 0
    %999 = vmatprep.subr.mxu0 0.0
    %1000 = vmatpush1.msra.mxu0 0.0
    %1001 = vmatprep.subr.mxu0 0.0
    %1002 = vmatpush1.msra.mxu0 0.0
    %1003 = vmatprep.subr.mxu0 0.0
    %1004 = vmatpush1.msra.mxu0 0.0
    %1005 = vmatprep.subr.mxu0 0.0
    %1006 = vmatpush1.msra.mxu0 0.0
    %1007 = vmatprep.subr.mxu0 0.0
    %1008 = vmatpush1.msra.mxu0 0.0
    %1009 = vmatprep.subr.mxu0 0.0
    %1010 = vmatpush1.msra.mxu0 0.0
    %1011 = vmatprep.subr.mxu0 0.0
    %1012 = vmatpush1.msra.mxu0 0.0
    %1013 = vmatprep.subr.mxu0 0.0
    %1014 = vmatpush1.msra.mxu0 0.0
    %1015 = vmatprep.subr.mxu0 0.0
    %1016 = vmatpush1.msra.mxu0 0.0
    %1017 = vmatprep.subr.mxu0 0.0
    %1018 = vmatpush1.msra.mxu0 0.0
    %1019 = vmatprep.subr.mxu0 0.0
    %1020 = vmatpush1.msra.mxu0 0.0
    %1021 = vmatprep.subr.mxu0 0.0
    %1022 = vmatpush1.msra.mxu0 0.0
    %1023 = vmatprep.subr.mxu0 0.0
    %1024 = vmatpush1.msra.mxu0 0.0
    %1025 = vmatprep.subr.mxu0 0.0
    %1026 = vmatpush1.msra.mxu0 0.0
    %1027 = vmatprep.subr.mxu0 0.0
    %1028 = vmatpush1.msra.mxu0 %v43
    %1029 = vmatprep.subr.mxu0 0.0
    %1030 = vmatpush1.msra.mxu0 %v42
    %1031 = vmatprep.subr.mxu0 0.0
    %1032 = vmatpush2.msra.mxu0 0.0
    %1033 = vmatprep.subr.mxu0 0.0
    %1034 = vmatpush2.msra.mxu0 0.0
    %1035 = vmatprep.subr.mxu0 0.0
    %1036 = vmatpush2.msra.mxu0 0.0
    %1037 = vmatprep.subr.mxu0 0.0
    %1038 = vmatpush2.msra.mxu0 0.0
    %1039 = vmatprep.subr.mxu0 0.0
    %1040 = vmatpush2.msra.mxu0 0.0
    %1041 = vmatprep.subr.mxu0 0.0
    %1042 = vmatpush2.msra.mxu0 0.0
    %1043 = vmatprep.subr.mxu0 0.0
    %1044 = vmatpush2.msra.mxu0 0.0
    %1045 = vmatprep.subr.mxu0 0.0
    %1046 = vmatpush2.msra.mxu0 0.0
    %1047 = vmatprep.subr.mxu0 0.0
    %1048 = vmatpush2.msra.mxu0 0.0
    %1049 = vmatprep.subr.mxu0 0.0
    %1050 = vmatpush2.msra.mxu0 0.0
    %1051 = vmatprep.subr.mxu0 0.0
    %1052 = vmatpush2.msra.mxu0 0.0
    %1053 = vmatprep.subr.mxu0 0.0
    %1054 = vmatpush2.msra.mxu0 0.0
    %1055 = vmatprep.subr.mxu0 0.0
    %1056 = vmatpush2.msra.mxu0 0.0
    %1057 = vmatprep.subr.mxu0 0.0
    %1058 = vmatpush2.msra.mxu0 0.0
    %1059 = vmatprep.subr.mxu0 0.0
    %1060 = vmatpush2.msra.mxu0 0.0
    %1061 = vmatprep.subr.mxu0 0.0
    %1062 = vmatpush2.msra.mxu0 0.0
    %1063 = vmatprep.mubr.f32.mxu0 0.0
    %1064 = vmatmul.mubr.f32.gmra.mxu0 %v997
    %v1065 = vpop.f32.mrf.mxu0
    %v1066 = vadd.f32 0.0, %v1065
    %v1067 = vpop.f32.mrf.mxu0
    %1068 = vdwg.mxu0
    %v1070 = vrot.slane %v1066, 1
    %v1073 = vadd.f32 %v989, %v1066
    %v1074 = vadd.f32 %v990, %v1070
    %v1075 = vxor.u32 %v1073, 2147483648
    %v1076 = vxor.u32 %v1074, 2147483648
    %v1077 = vmul.f32 %v1075, 1.442695
    %v1078 = vpow.pop %v1077
    %v1079 = vmul.f32 %v1076, 1.442695
    %v1080 = vpow.pop %v1079
    %v1081 = vadd.f32 %v1078, 1.0
    %v1082 = vadd.f32 %v1080, 1.0
    %v1083 = vrcp.pop %v1081
    %v1084 = vmul.f32 1.0, %v1083
    %v1085 = vrcp.pop %v1082
    %v1086 = vmul.f32 1.0, %v1085
    %v1087 = vtanh.pop %v1073
    %v1088 = vtanh.pop %v1074
    %v1089 = vmul.f32 %v1084, %v975
    %v1090 = vmul.f32 %v1086, %v976
    %1093 = vrot.lane.b32.xlu0 %v1087, 96
    %v1094 = vpop.permute.xlu0 %1093
    %1095 = vrot.lane.b32.xlu0 %v1088, 96
    %v1096 = vpop.permute.xlu0 %1095
    %v1099 = vmul.f32 %v1084, %v1094
    %v1100 = vmul.f32 %v1086, %v1096
    %1103 = vrot.lane.b32.xlu0 %v1099, 16
    %v1104 = vpop.permute.xlu0 %1103
    %1105 = vrot.lane.b32.xlu0 %v1100, 16
    %v1106 = vpop.permute.xlu0 %1105
    %v1109 = vadd.f32 %v1089, %v1104
    %v1110 = vadd.f32 %v1090, %v1106
    %v1111 = vtanh.pop %v1109
    %v1112 = vtanh.pop %v1110
    %1115 = vrot.lane.b32.xlu0 %v1111, 32
    %v1116 = vpop.permute.xlu0 %1115
    %1117 = vrot.lane.b32.xlu0 %v1112, 32
    %v1118 = vpop.permute.xlu0 %1117
    %v1121 = vmul.f32 %v1084, %v1116
    %v1122 = vmul.f32 %v1086, %v1118
    %v1125 = vrot.slane %v1122, 7
    %v1126 = vsel %vm189, %v1125, %v1121
    %1127 = vrot.lane.b32.xlu0 %v1126, 80
    %v1128 = vpop.permute.xlu0 %1127
    %vm1130 = vcmask 123904
    %1131 = vst.msk [vmem:[#allocation2] sm:$0x3] %vm1130, %v1128
    %v1134 = vrot.slane %v1110, 7
    %v1135 = vsel %vm189, %v1134, %v1109
    %1136 = vrot.lane.b32.xlu0 %v1135, 112
    %v1137 = vpop.permute.xlu0 %1136
    %1139 = vst.msk [vmem:[#allocation3] sm:$0x3] %vm1130, %v1137
    // Predicated region
    $region22: #{lstm_net_forward.3} parent=1 // pred_check
      %p1140 = pneg %p35
    $region23: #{lstm_net_forward.3} parent=1 // pred_check_branch
      %1142 = sbr.rel (%p1140) target = $region25
    $region24: #{lstm_net_forward.3} parent=1 // pred_region
      %v1143 = vld [vmem:[#allocation2] sm:$0x3]
      %v1144 = vld [vmem:[%s2] sm:$0xff]
      %v1145 = vld [vmem:[%s2 + $0x8] sm:$0xff]
      %v1146 = vld [vmem:[%s3] sm:$0x1]
      %v1148 = vlaneseq
      %v1149 = vshrl.u32 %v1148, 7
      %v1150 = vsub.s32 0, %v1149
      %v1151 = vrot.slane %v1146, %v1150
      %v1154 = vsel %vm48, %v1143, 0
      %1156 = vmatprep.subr.mxu0 0.0
      %1157 = vmatpush1.msra.mxu0 0.0
      %1158 = vmatprep.subr.mxu0 0.0
      %1159 = vmatpush1.msra.mxu0 0.0
      %1160 = vmatprep.subr.mxu0 0.0
      %1161 = vmatpush1.msra.mxu0 0.0
      %1162 = vmatprep.subr.mxu0 0.0
      %1163 = vmatpush1.msra.mxu0 0.0
      %1164 = vmatprep.subr.mxu0 0.0
      %1165 = vmatpush1.msra.mxu0 0.0
      %1166 = vmatprep.subr.mxu0 0.0
      %1167 = vmatpush1.msra.mxu0 0.0
      %1168 = vmatprep.subr.mxu0 0.0
      %1169 = vmatpush1.msra.mxu0 0.0
      %1170 = vmatprep.subr.mxu0 0.0
      %1171 = vmatpush1.msra.mxu0 0.0
      %1172 = vmatprep.subr.mxu0 0.0
      %1173 = vmatpush1.msra.mxu0 0.0
      %1174 = vmatprep.subr.mxu0 0.0
      %1175 = vmatpush1.msra.mxu0 0.0
      %1176 = vmatprep.subr.mxu0 0.0
      %1177 = vmatpush1.msra.mxu0 0.0
      %1178 = vmatprep.subr.mxu0 0.0
      %1179 = vmatpush1.msra.mxu0 0.0
      %1180 = vmatprep.subr.mxu0 0.0
      %1181 = vmatpush1.msra.mxu0 0.0
      %1182 = vmatprep.subr.mxu0 0.0
      %1183 = vmatpush1.msra.mxu0 0.0
      %1184 = vmatprep.subr.mxu0 0.0
      %1185 = vmatpush1.msra.mxu0 %v1145
      %1186 = vmatprep.subr.mxu0 0.0
      %1187 = vmatpush1.msra.mxu0 %v1144
      %1188 = vmatprep.subr.mxu0 0.0
      %1189 = vmatpush2.msra.mxu0 0.0
      %1190 = vmatprep.subr.mxu0 0.0
      %1191 = vmatpush2.msra.mxu0 0.0
      %1192 = vmatprep.subr.mxu0 0.0
      %1193 = vmatpush2.msra.mxu0 0.0
      %1194 = vmatprep.subr.mxu0 0.0
      %1195 = vmatpush2.msra.mxu0 0.0
      %1196 = vmatprep.subr.mxu0 0.0
      %1197 = vmatpush2.msra.mxu0 0.0
      %1198 = vmatprep.subr.mxu0 0.0
      %1199 = vmatpush2.msra.mxu0 0.0
      %1200 = vmatprep.subr.mxu0 0.0
      %1201 = vmatpush2.msra.mxu0 0.0
      %1202 = vmatprep.subr.mxu0 0.0
      %1203 = vmatpush2.msra.mxu0 0.0
      %1204 = vmatprep.subr.mxu0 0.0
      %1205 = vmatpush2.msra.mxu0 0.0
      %1206 = vmatprep.subr.mxu0 0.0
      %1207 = vmatpush2.msra.mxu0 0.0
      %1208 = vmatprep.subr.mxu0 0.0
      %1209 = vmatpush2.msra.mxu0 0.0
      %1210 = vmatprep.subr.mxu0 0.0
      %1211 = vmatpush2.msra.mxu0 0.0
      %1212 = vmatprep.subr.mxu0 0.0
      %1213 = vmatpush2.msra.mxu0 0.0
      %1214 = vmatprep.subr.mxu0 0.0
      %1215 = vmatpush2.msra.mxu0 0.0
      %1216 = vmatprep.subr.mxu0 0.0
      %1217 = vmatpush2.msra.mxu0 0.0
      %1218 = vmatprep.subr.mxu0 0.0
      %1219 = vmatpush2.msra.mxu0 0.0
      %1220 = vmatprep.mubr.f32.mxu0 0.0
      %1221 = vmatmul.mubr.f32.gmra.mxu0 %v1154
      %v1222 = vpop.f32.mrf.mxu0
      %v1223 = vadd.f32 %v1151, %v1222
      %v1224 = vpop.f32.mrf.mxu0
      %1225 = vdwg.mxu0
      %v1226 = vmax.f32 %v1223, 0.0
      %vm1227 = vcmask 41984
      %1228 = vst.msk [vmem:[#allocation4] sm:$0x3] %vm1227, %v1226
    $region25: #{lstm_net_forward.3} parent=1 // pred_fallthru
      _
    // Predicated region
    $region26: #{lstm_net_forward.3} parent=1 // pred_check
      _
    $region27: #{lstm_net_forward.3} parent=1 // pred_check_branch
      %1230 = sbr.rel (0) target = $region29
    $region28: #{lstm_net_forward.3} parent=1 // pred_region
      %s1232 = ssub.s32 32, 32
      %1233 = vsyncadd [#allocation5], %s1232
      %s1235 = sshll.u32 [#allocation4], 4
      %s1236 = int_to_ptr.vmem [resolvable:$true] %s1235
      %1238 = dma.vmem_to_hbm [thread:$0]  %s1236, 32, %s4, [#allocation5]
    $region29: #{lstm_net_forward.3} parent=1 // pred_fallthru
      _
    // Predicated region
    $region30: #{lstm_net_forward.3} parent=1 // pred_check
      _
    $region31: #{lstm_net_forward.3} parent=1 // pred_check_branch
      %1240 = sbr.rel (0) target = $region33
    $region32: #{lstm_net_forward.3} parent=1 // pred_region
      %1241 = dma.done [#allocation5], 32
    $region33: #{lstm_net_forward.3} parent=1 // pred_fallthru
      _
    %1242 = vsyncpa [#allocation5], 1

</llo_original>
